<compile_context>
chip_gen: v7x
topology: tpu7x:2x2x1
jax: 0.10.0
libtpu: 0.0.40
codegen_flags: <defaults>
</compile_context>

<pallas_src>
import jax
import jax.numpy as jnp
from jax import lax
from jax.experimental import pallas as pl
from jax.experimental.pallas import tpu as pltpu


# ------------------------------ fused kernel ------------------------------- #

def _bottleneck_kernel(x_hbm, w1_ref, w2_ref, w3_ref,
                       s1_ref, b1_ref, s2_ref, b2_ref, s3_ref, b3_ref,
                       o_ref, x_halo, out1_pad, sem):
    """One (batch, row-tile) grid step of the fused Bottleneck.

    x_hbm    : (N, H, W, Cin) f32 in HBM (memory_space=pl.ANY)
    w1_ref   : (Cin, P)   bf16  conv1 1x1
    w2_ref   : (9*P, P)   bf16  conv2 3x3 in tap-major im2col layout
    w3_ref   : (P, Cout)  bf16  conv3 1x1
    s*/b*    : (1, C)     f32   folded BN scale / bias
    o_ref    : (1, TH, W, Cout) f32 output block (auto-pipelined)
    x_halo   : VMEM (TH+2, W, Cin) f32 scratch (tile rows + halo rows)
    out1_pad : VMEM (TH+2, W+2, P) bf16 scratch (zero-padded conv2 input)
    sem      : DMA semaphores (3,)
    """
    _, TH, W, Cout = o_ref.shape
    Cin = x_halo.shape[-1]
    P = w1_ref.shape[1]

    n = pl.program_id(0)
    r = pl.program_id(1)
    nr = pl.num_programs(1)
    r0 = r * TH

    # ---- fetch x rows [r0-1, r0+TH+1), clipped to the image ---------------
    body_cp = pltpu.make_async_copy(
        x_hbm.at[n, pl.ds(r0, TH)], x_halo.at[pl.ds(1, TH)], sem.at[0])
    body_cp.start()

    @pl.when(r > 0)
    def _():
        pltpu.make_async_copy(x_hbm.at[n, pl.ds(r0 - 1, 1)],
                              x_halo.at[pl.ds(0, 1)], sem.at[1]).start()

    @pl.when(r < nr - 1)
    def _():
        pltpu.make_async_copy(x_hbm.at[n, pl.ds(r0 + TH, 1)],
                              x_halo.at[pl.ds(TH + 1, 1)], sem.at[2]).start()

    # Zero the padded conv2 input while the DMAs are in flight; this also
    # provides the zero W-halo columns (0 and W+1) for free.
    out1_pad[...] = jnp.zeros_like(out1_pad)

    body_cp.wait()

    @pl.when(r > 0)
    def _():
        pltpu.make_async_copy(x_hbm.at[n, pl.ds(r0 - 1, 1)],
                              x_halo.at[pl.ds(0, 1)], sem.at[1]).wait()

    @pl.when(r < nr - 1)
    def _():
        pltpu.make_async_copy(x_hbm.at[n, pl.ds(r0 + TH, 1)],
                              x_halo.at[pl.ds(TH + 1, 1)], sem.at[2]).wait()

    # ---- conv1 (1x1) + bn1 + relu on the TH+2 halo rows --------------------
    x_rows = x_halo[...]                                     # (TH+2, W, Cin) f32
    xb = x_rows.reshape((TH + 2) * W, Cin).astype(jnp.bfloat16)
    y1 = jnp.dot(xb, w1_ref[...], preferred_element_type=jnp.float32)
    y1 = jnp.maximum(y1 * s1_ref[...] + b1_ref[...], 0.0)    # f32 BN epilogue
    out1_pad[:, 1:W + 1, :] = y1.reshape(TH + 2, W, P).astype(out1_pad.dtype)

    # Halo rows that fall outside the image must be zero (conv2 zero padding).
    @pl.when(r == 0)
    def _():
        out1_pad[0:1, :, :] = jnp.zeros((1, W + 2, P), out1_pad.dtype)

    @pl.when(r == nr - 1)
    def _():
        out1_pad[TH + 1:TH + 2, :, :] = jnp.zeros((1, W + 2, P), out1_pad.dtype)

    # ---- conv2 (3x3, pad 1) as ONE im2col matmul (K = 9*P) + bn2 + relu ----
    o1 = out1_pad[...]                                       # (TH+2, W+2, P) bf16
    cols = [o1[ky:ky + TH, kx:kx + W, :].reshape(TH * W, P)
            for ky in range(3) for kx in range(3)]           # tap-major order
    x2 = jnp.concatenate(cols, axis=-1)                      # (TH*W, 9*P)
    y2 = jnp.dot(x2, w2_ref[...], preferred_element_type=jnp.float32)
    y2 = jnp.maximum(y2 * s2_ref[...] + b2_ref[...], 0.0)    # (TH*W, P) f32

    # ---- conv3 (1x1) + bn3 + identity residual + relu ----------------------
    y3 = jnp.dot(y2.astype(jnp.bfloat16), w3_ref[...],
                 preferred_element_type=jnp.float32)          # (TH*W, Cout)
    res = x_rows[1:TH + 1].reshape(TH * W, Cin)               # identity, f32
    out = jnp.maximum(y3 * s3_ref[...] + b3_ref[...] + res, 0.0)
    o_ref[...] = out.reshape(1, TH, W, Cout).astype(o_ref.dtype)


# -------------------------------- wrapper ----------------------------------- #

def _fold_bn(gamma, beta, mean, var, eps=1e-5):
    scale = gamma / jnp.sqrt(var + eps)
    bias = beta - mean * scale
    return (scale.reshape(1, -1).astype(jnp.float32),
            bias.reshape(1, -1).astype(jnp.float32))


def _pick_row_tile(H, W, Cin, P, Cout, budget_bytes=8 << 20):
    """Largest divisor of H whose per-tile working set fits a conservative
    VMEM budget (sized for v7x's 64 MiB VMEM; v5e/v6e have more headroom)."""
    best = 1
    for th in range(1, H + 1):
        if H % th:
            continue
        need = ((th + 2) * W * Cin * 4            # x halo scratch (f32)
                + (th + 2) * (W + 2) * P * 2      # padded out1 (bf16)
                + th * W * 9 * P * 2              # im2col operand (bf16)
                + th * W * (P + Cout) * 4         # f32 intermediates
                + 2 * th * W * Cout * 4)          # double-buffered output block
        if need <= budget_bytes:
            best = th
    return best


def bottleneck_forward(x_nchw, params, *, row_tile=None):
    """Bottleneck forward (dcn=None, downsample=None, stride=1). NCHW in/out."""
    N, Cin, H, W = x_nchw.shape
    P = params["w1"].shape[1]          # planes
    Cout = params["w3"].shape[1]       # planes * 4
    assert Cout == Cin, "identity residual requires inplanes == planes * 4"

    if row_tile is None:
        row_tile = _pick_row_tile(H, W, Cin, P, Cout)
    assert H % row_tile == 0, "row_tile must divide H"
    TH = row_tile
    nr = H // TH

    x = jnp.transpose(x_nchw, (0, 2, 3, 1)).astype(jnp.float32)   # NHWC

    s1, b1 = _fold_bn(params["bn1_g"], params["bn1_b"], params["bn1_m"], params["bn1_v"])
    s2, b2 = _fold_bn(params["bn2_g"], params["bn2_b"], params["bn2_m"], params["bn2_v"])
    s3, b3 = _fold_bn(params["bn3_g"], params["bn3_b"], params["bn3_m"], params["bn3_v"])

    # bf16 MXU operands (f32 accumulation + f32 epilogue inside the kernel).
    w1 = params["w1"].astype(jnp.bfloat16)                         # (Cin, P)
    w2 = params["w2"].reshape(9 * P, P).astype(jnp.bfloat16)       # (9P, P) tap-major
    w3 = params["w3"].astype(jnp.bfloat16)                         # (P, Cout)

    flops = 2 * N * H * W * (Cin * P + 9 * P * P + P * Cout)
    bytes_accessed = (4 * N * H * W * (Cin + Cout)
                      + 2 * (Cin * P + 9 * P * P + P * Cout)
                      + 4 * (4 * P + 2 * Cout))
    cost = pl.CostEstimate(flops=flops, transcendentals=0,
                           bytes_accessed=bytes_accessed)

    out_nhwc = pl.pallas_call(
        _bottleneck_kernel,
        out_shape=jax.ShapeDtypeStruct((N, H, W, Cout), jnp.float32),
        grid=(N, nr),
        in_specs=[
            pl.BlockSpec(memory_space=pl.ANY),                     # x stays in HBM
            pl.BlockSpec((Cin, P), lambda n, r: (0, 0)),           # w1 (resident)
            pl.BlockSpec((9 * P, P), lambda n, r: (0, 0)),         # w2 (resident)
            pl.BlockSpec((P, Cout), lambda n, r: (0, 0)),          # w3 (resident)
            pl.BlockSpec((1, P), lambda n, r: (0, 0)),             # s1
            pl.BlockSpec((1, P), lambda n, r: (0, 0)),             # b1
            pl.BlockSpec((1, P), lambda n, r: (0, 0)),             # s2
            pl.BlockSpec((1, P), lambda n, r: (0, 0)),             # b2
            pl.BlockSpec((1, Cout), lambda n, r: (0, 0)),          # s3
            pl.BlockSpec((1, Cout), lambda n, r: (0, 0)),          # b3
        ],
        out_specs=pl.BlockSpec((1, TH, W, Cout), lambda n, r: (n, r, 0, 0)),
        scratch_shapes=[
            pltpu.VMEM((TH + 2, W, Cin), jnp.float32),             # x halo rows
            pltpu.VMEM((TH + 2, W + 2, P), jnp.bfloat16),          # padded out1
            pltpu.SemaphoreType.DMA((3,)),
        ],
        compiler_params=pltpu.CompilerParams(
            dimension_semantics=("parallel", "parallel")),
        cost_estimate=cost,
    )(x, w1, w2, w3, s1, b1, s2, b2, s3, b3)

    return jnp.transpose(out_nhwc, (0, 3, 1, 2))                   # back to NCHW


# --------------------------- pure-JAX reference ------------------------------ #

def bottleneck_reference(x_nchw, params):
    def bn(y, g, b, m, v, eps=1e-5):
        g = g.reshape(1, -1, 1, 1); b = b.reshape(1, -1, 1, 1)
        m = m.reshape(1, -1, 1, 1); v = v.reshape(1, -1, 1, 1)
        return (y - m) / jnp.sqrt(v + eps) * g + b

    dn = ("NCHW", "OIHW", "NCHW")
    w1 = jnp.transpose(params["w1"], (1, 0))[:, :, None, None]            # (P, Cin, 1, 1)
    P = params["w1"].shape[1]
    w2 = jnp.transpose(params["w2"].reshape(3, 3, P, P), (3, 2, 0, 1))     # (P, P, 3, 3)
    w3 = jnp.transpose(params["w3"], (1, 0))[:, :, None, None]            # (4P, P, 1, 1)

    out = lax.conv_general_dilated(x_nchw, w1, (1, 1), "VALID", dimension_numbers=dn)
    out = jax.nn.relu(bn(out, params["bn1_g"], params["bn1_b"], params["bn1_m"], params["bn1_v"]))
    out = lax.conv_general_dilated(out, w2, (1, 1), ((1, 1), (1, 1)), dimension_numbers=dn)
    out = jax.nn.relu(bn(out, params["bn2_g"], params["bn2_b"], params["bn2_m"], params["bn2_v"]))
    out = lax.conv_general_dilated(out, w3, (1, 1), "VALID", dimension_numbers=dn)
    out = bn(out, params["bn3_g"], params["bn3_b"], params["bn3_m"], params["bn3_v"])
    return jax.nn.relu(out + x_nchw)


# ---------------------------------- main ------------------------------------ #

if __name__ == "__main__":
    # Small shapes: inplanes = planes * expansion so downsample=None is valid.
    N, H, W = 2, 16, 16
    planes = 4
    inplanes = planes * 4          # 16
    key = jax.random.PRNGKey(0)
    ks = jax.random.split(key, 13)

    params = {
        # conv weights stored kernel-ready: (Cin, Cout) / (9, Cin, Cout)
        "w1": jax.random.normal(ks[0], (inplanes, planes), jnp.float32) * 0.1,
        "w2": jax.random.normal(ks[1], (9, planes, planes), jnp.float32) * 0.1,
        "w3": jax.random.normal(ks[2], (planes, planes * 4), jnp.float32) * 0.1,
        "bn1_g": jax.random.uniform(ks[3], (planes,), jnp.float32, 0.5, 1.5),
        "bn1_b": jax.random.normal(ks[4], (planes,), jnp.float32) * 0.1,
        "bn1_m": jax.random.normal(ks[5], (planes,), jnp.float32) * 0.1,
        "bn1_v": jax.random.uniform(ks[6], (planes,), jnp.float32, 0.5, 1.5),
        "bn2_g": jax.random.uniform(ks[7], (planes,), jnp.float32, 0.5, 1.5),
        "bn2_b": jax.random.normal(ks[8], (planes,), jnp.float32) * 0.1,
        "bn2_m": jax.random.normal(ks[9], (planes,), jnp.float32) * 0.1,
        "bn2_v": jax.random.uniform(ks[10], (planes,), jnp.float32, 0.5, 1.5),
        "bn3_g": jax.random.uniform(ks[11], (planes * 4,), jnp.float32, 0.5, 1.5),
        "bn3_b": jnp.zeros((planes * 4,), jnp.float32),
        "bn3_m": jnp.zeros((planes * 4,), jnp.float32),
        "bn3_v": jnp.ones((planes * 4,), jnp.float32),
    }

    x = jax.random.normal(ks[12], (N, inplanes, H, W), jnp.float32)

    # row_tile=8 -> grid (N, 2): exercises both the image-border and the
    # inter-tile halo-fetch paths.
    out = jax.block_until_ready(bottleneck_forward(x, params, row_tile=8))
    ref = jax.block_until_ready(bottleneck_reference(x, params))

    assert out.shape == (N, inplanes, H, W)
    # bf16 MXU operands (f32 accumulation) -> slightly looser tolerance vs f32 ref.
    assert jnp.allclose(out, ref, atol=5e-2, rtol=5e-2), "mismatch vs reference"

    print("KERNEL_OK")
</pallas_src>

<mosaic_0001>
module attributes {stable_mosaic.version = 11 : i64} {
  func.func @_bottleneck_kernel(%arg0: i32, %arg1: i32, %arg2: memref<2x16x16x16xf32, #tpu.memory_space<any>>, %arg3: memref<16x4xbf16, #tpu.memory_space<vmem>>, %arg4: memref<36x4xbf16, #tpu.memory_space<vmem>>, %arg5: memref<4x16xbf16, #tpu.memory_space<vmem>>, %arg6: memref<1x4xf32, #tpu.memory_space<vmem>>, %arg7: memref<1x4xf32, #tpu.memory_space<vmem>>, %arg8: memref<1x4xf32, #tpu.memory_space<vmem>>, %arg9: memref<1x4xf32, #tpu.memory_space<vmem>>, %arg10: memref<1x16xf32, #tpu.memory_space<vmem>>, %arg11: memref<1x16xf32, #tpu.memory_space<vmem>>, %arg12: memref<1x8x16x16xf32, #tpu.memory_space<vmem>>, %arg13: memref<10x16x16xf32, #tpu.memory_space<vmem>>, %arg14: memref<10x18x4xbf16, #tpu.memory_space<vmem>>, %arg15: memref<3x!tpu.dma_semaphore, #tpu.memory_space<semaphore_mem>>) attributes {dimension_semantics = [#tpu.dimension_semantics<parallel>, #tpu.dimension_semantics<parallel>], iteration_bounds = array<i64: 2, 2>, scalar_prefetch = 0 : i64, scratch_operands = 3 : i64, tpu.core_type = #tpu.core_type<tc>, window_params = [{}, {pipeline_mode = #tpu.pipeline_mode<synchronous>, transform_indices = @transform_1, window_bounds = array<i64: 16, 4>}, {pipeline_mode = #tpu.pipeline_mode<synchronous>, transform_indices = @transform_2, window_bounds = array<i64: 36, 4>}, {pipeline_mode = #tpu.pipeline_mode<synchronous>, transform_indices = @transform_3, window_bounds = array<i64: 4, 16>}, {pipeline_mode = #tpu.pipeline_mode<synchronous>, transform_indices = @transform_4, window_bounds = array<i64: 1, 4>}, {pipeline_mode = #tpu.pipeline_mode<synchronous>, transform_indices = @transform_5, window_bounds = array<i64: 1, 4>}, {pipeline_mode = #tpu.pipeline_mode<synchronous>, transform_indices = @transform_6, window_bounds = array<i64: 1, 4>}, {pipeline_mode = #tpu.pipeline_mode<synchronous>, transform_indices = @transform_7, window_bounds = array<i64: 1, 4>}, {pipeline_mode = #tpu.pipeline_mode<synchronous>, transform_indices = @transform_8, window_bounds = array<i64: 1, 16>}, {pipeline_mode = #tpu.pipeline_mode<synchronous>, transform_indices = @transform_9, window_bounds = array<i64: 1, 16>}, {transform_indices = @transform_10, window_bounds = array<i64: 1, 8, 16, 16>}]} {
    %c8_i32 = arith.constant 8 : i32
    %0 = arith.muli %arg1, %c8_i32 : i32
    %c0_i32 = arith.constant 0 : i32
    %c0_i32_0 = arith.constant 0 : i32
    %c0_i32_1 = arith.constant 0 : i32
    %1 = tpu.memref_slice %arg2[%arg0, %0, %c0_i32_0, %c0_i32_1] : memref<2x16x16x16xf32, #tpu.memory_space<any>> -> memref<1x8x16x16xf32, #tpu.memory_space<any>>
    %2 = tpu.memref_squeeze %1 : memref<1x8x16x16xf32, #tpu.memory_space<any>> -> memref<8x16x16xf32, #tpu.memory_space<any>>
    %c1_i32 = arith.constant 1 : i32
    %c0_i32_2 = arith.constant 0 : i32
    %c0_i32_3 = arith.constant 0 : i32
    %3 = tpu.memref_slice %arg13[%c1_i32, %c0_i32_2, %c0_i32_3] : memref<10x16x16xf32, #tpu.memory_space<vmem>> -> memref<8x16x16xf32, #tpu.memory_space<vmem>>
    %4 = tpu.memref_slice %arg15[%c0_i32] : memref<3x!tpu.dma_semaphore, #tpu.memory_space<semaphore_mem>> -> memref<1x!tpu.dma_semaphore, #tpu.memory_space<semaphore_mem>>
    %5 = tpu.memref_squeeze %4 : memref<1x!tpu.dma_semaphore, #tpu.memory_space<semaphore_mem>> -> memref<!tpu.dma_semaphore, #tpu.memory_space<semaphore_mem>>
    tpu.enqueue_dma source(%2 : memref<8x16x16xf32, #tpu.memory_space<any>>) target(%3 : memref<8x16x16xf32, #tpu.memory_space<vmem>>) target_semaphore(%5 : memref<!tpu.dma_semaphore, #tpu.memory_space<semaphore_mem>>)
    %c0_i32_4 = arith.constant 0 : i32
    %6 = arith.cmpi sgt, %arg1, %c0_i32_4 : i32
    %7 = arith.extui %6 : i1 to i32
    %c0_i32_5 = arith.constant 0 : i32
    %8 = arith.cmpi ne, %7, %c0_i32_5 : i32
    scf.if %8 {
      %c1_i32_60 = arith.constant 1 : i32
      %93 = arith.subi %0, %c1_i32_60 : i32
      %c1_i32_61 = arith.constant 1 : i32
      %c0_i32_62 = arith.constant 0 : i32
      %c0_i32_63 = arith.constant 0 : i32
      %94 = tpu.memref_slice %arg2[%arg0, %93, %c0_i32_62, %c0_i32_63] : memref<2x16x16x16xf32, #tpu.memory_space<any>> -> memref<1x1x16x16xf32, #tpu.memory_space<any>>
      %95 = tpu.memref_squeeze %94 : memref<1x1x16x16xf32, #tpu.memory_space<any>> -> memref<1x16x16xf32, #tpu.memory_space<any>>
      %c0_i32_64 = arith.constant 0 : i32
      %c0_i32_65 = arith.constant 0 : i32
      %c0_i32_66 = arith.constant 0 : i32
      %96 = tpu.memref_slice %arg13[%c0_i32_64, %c0_i32_65, %c0_i32_66] : memref<10x16x16xf32, #tpu.memory_space<vmem>> -> memref<1x16x16xf32, #tpu.memory_space<vmem>>
      %97 = tpu.memref_slice %arg15[%c1_i32_61] : memref<3x!tpu.dma_semaphore, #tpu.memory_space<semaphore_mem>> -> memref<1x!tpu.dma_semaphore, #tpu.memory_space<semaphore_mem>>
      %98 = tpu.memref_squeeze %97 : memref<1x!tpu.dma_semaphore, #tpu.memory_space<semaphore_mem>> -> memref<!tpu.dma_semaphore, #tpu.memory_space<semaphore_mem>>
      tpu.enqueue_dma source(%95 : memref<1x16x16xf32, #tpu.memory_space<any>>) target(%96 : memref<1x16x16xf32, #tpu.memory_space<vmem>>) target_semaphore(%98 : memref<!tpu.dma_semaphore, #tpu.memory_space<semaphore_mem>>)
    } else {
    }
    %c1_i32_6 = arith.constant 1 : i32
    %9 = arith.cmpi slt, %arg1, %c1_i32_6 : i32
    %10 = arith.extui %9 : i1 to i32
    %c0_i32_7 = arith.constant 0 : i32
    %11 = arith.cmpi ne, %10, %c0_i32_7 : i32
    scf.if %11 {
      %c8_i32_60 = arith.constant 8 : i32
      %93 = arith.addi %0, %c8_i32_60 : i32
      %c2_i32 = arith.constant 2 : i32
      %c0_i32_61 = arith.constant 0 : i32
      %c0_i32_62 = arith.constant 0 : i32
      %94 = tpu.memref_slice %arg2[%arg0, %93, %c0_i32_61, %c0_i32_62] : memref<2x16x16x16xf32, #tpu.memory_space<any>> -> memref<1x1x16x16xf32, #tpu.memory_space<any>>
      %95 = tpu.memref_squeeze %94 : memref<1x1x16x16xf32, #tpu.memory_space<any>> -> memref<1x16x16xf32, #tpu.memory_space<any>>
      %c9_i32 = arith.constant 9 : i32
      %c0_i32_63 = arith.constant 0 : i32
      %c0_i32_64 = arith.constant 0 : i32
      %96 = tpu.memref_slice %arg13[%c9_i32, %c0_i32_63, %c0_i32_64] : memref<10x16x16xf32, #tpu.memory_space<vmem>> -> memref<1x16x16xf32, #tpu.memory_space<vmem>>
      %97 = tpu.memref_slice %arg15[%c2_i32] : memref<3x!tpu.dma_semaphore, #tpu.memory_space<semaphore_mem>> -> memref<1x!tpu.dma_semaphore, #tpu.memory_space<semaphore_mem>>
      %98 = tpu.memref_squeeze %97 : memref<1x!tpu.dma_semaphore, #tpu.memory_space<semaphore_mem>> -> memref<!tpu.dma_semaphore, #tpu.memory_space<semaphore_mem>>
      tpu.enqueue_dma source(%95 : memref<1x16x16xf32, #tpu.memory_space<any>>) target(%96 : memref<1x16x16xf32, #tpu.memory_space<vmem>>) target_semaphore(%98 : memref<!tpu.dma_semaphore, #tpu.memory_space<semaphore_mem>>)
    } else {
    }
    %cst = arith.constant 0.000000e+00 : bf16
    %12 = vector.broadcast %cst : bf16 to vector<10x18x4xbf16>
    %c0 = arith.constant 0 : index
    %c0_8 = arith.constant 0 : index
    %c0_9 = arith.constant 0 : index
    %13 = vector.load %arg14[%c0, %c0_8, %c0_9] : memref<10x18x4xbf16, #tpu.memory_space<vmem>>, vector<10x18x4xbf16>
    tpu.vector_store %arg14[%c0, %c0_8, %c0_9], %12 {strides = array<i32>} : memref<10x18x4xbf16, #tpu.memory_space<vmem>>, vector<10x18x4xbf16>,
    %c0_i32_10 = arith.constant 0 : i32
    %c0_i32_11 = arith.constant 0 : i32
    %c0_i32_12 = arith.constant 0 : i32
    %14 = tpu.memref_slice %arg2[%arg0, %0, %c0_i32_11, %c0_i32_12] : memref<2x16x16x16xf32, #tpu.memory_space<any>> -> memref<1x8x16x16xf32, #tpu.memory_space<any>>
    %15 = tpu.memref_squeeze %14 : memref<1x8x16x16xf32, #tpu.memory_space<any>> -> memref<8x16x16xf32, #tpu.memory_space<any>>
    %c1_i32_13 = arith.constant 1 : i32
    %c0_i32_14 = arith.constant 0 : i32
    %c0_i32_15 = arith.constant 0 : i32
    %16 = tpu.memref_slice %arg13[%c1_i32_13, %c0_i32_14, %c0_i32_15] : memref<10x16x16xf32, #tpu.memory_space<vmem>> -> memref<8x16x16xf32, #tpu.memory_space<vmem>>
    %17 = tpu.memref_slice %arg15[%c0_i32_10] : memref<3x!tpu.dma_semaphore, #tpu.memory_space<semaphore_mem>> -> memref<1x!tpu.dma_semaphore, #tpu.memory_space<semaphore_mem>>
    %18 = tpu.memref_squeeze %17 : memref<1x!tpu.dma_semaphore, #tpu.memory_space<semaphore_mem>> -> memref<!tpu.dma_semaphore, #tpu.memory_space<semaphore_mem>>
    tpu.wait_dma2 semaphore(%18 : memref<!tpu.dma_semaphore, #tpu.memory_space<semaphore_mem>>) src(%15 : memref<8x16x16xf32, #tpu.memory_space<any>>) dst(%16 : memref<8x16x16xf32, #tpu.memory_space<vmem>>)
    %c0_i32_16 = arith.constant 0 : i32
    %19 = arith.cmpi sgt, %arg1, %c0_i32_16 : i32
    %20 = arith.extui %19 : i1 to i32
    %c0_i32_17 = arith.constant 0 : i32
    %21 = arith.cmpi ne, %20, %c0_i32_17 : i32
    scf.if %21 {
      %c1_i32_60 = arith.constant 1 : i32
      %93 = arith.subi %0, %c1_i32_60 : i32
      %c1_i32_61 = arith.constant 1 : i32
      %c0_i32_62 = arith.constant 0 : i32
      %c0_i32_63 = arith.constant 0 : i32
      %94 = tpu.memref_slice %arg2[%arg0, %93, %c0_i32_62, %c0_i32_63] : memref<2x16x16x16xf32, #tpu.memory_space<any>> -> memref<1x1x16x16xf32, #tpu.memory_space<any>>
      %95 = tpu.memref_squeeze %94 : memref<1x1x16x16xf32, #tpu.memory_space<any>> -> memref<1x16x16xf32, #tpu.memory_space<any>>
      %c0_i32_64 = arith.constant 0 : i32
      %c0_i32_65 = arith.constant 0 : i32
      %c0_i32_66 = arith.constant 0 : i32
      %96 = tpu.memref_slice %arg13[%c0_i32_64, %c0_i32_65, %c0_i32_66] : memref<10x16x16xf32, #tpu.memory_space<vmem>> -> memref<1x16x16xf32, #tpu.memory_space<vmem>>
      %97 = tpu.memref_slice %arg15[%c1_i32_61] : memref<3x!tpu.dma_semaphore, #tpu.memory_space<semaphore_mem>> -> memref<1x!tpu.dma_semaphore, #tpu.memory_space<semaphore_mem>>
      %98 = tpu.memref_squeeze %97 : memref<1x!tpu.dma_semaphore, #tpu.memory_space<semaphore_mem>> -> memref<!tpu.dma_semaphore, #tpu.memory_space<semaphore_mem>>
      tpu.wait_dma2 semaphore(%98 : memref<!tpu.dma_semaphore, #tpu.memory_space<semaphore_mem>>) src(%95 : memref<1x16x16xf32, #tpu.memory_space<any>>) dst(%96 : memref<1x16x16xf32, #tpu.memory_space<vmem>>)
    } else {
    }
    %c1_i32_18 = arith.constant 1 : i32
    %22 = arith.cmpi slt, %arg1, %c1_i32_18 : i32
    %23 = arith.extui %22 : i1 to i32
    %c0_i32_19 = arith.constant 0 : i32
    %24 = arith.cmpi ne, %23, %c0_i32_19 : i32
    scf.if %24 {
      %c8_i32_60 = arith.constant 8 : i32
      %93 = arith.addi %0, %c8_i32_60 : i32
      %c2_i32 = arith.constant 2 : i32
      %c0_i32_61 = arith.constant 0 : i32
      %c0_i32_62 = arith.constant 0 : i32
      %94 = tpu.memref_slice %arg2[%arg0, %93, %c0_i32_61, %c0_i32_62] : memref<2x16x16x16xf32, #tpu.memory_space<any>> -> memref<1x1x16x16xf32, #tpu.memory_space<any>>
      %95 = tpu.memref_squeeze %94 : memref<1x1x16x16xf32, #tpu.memory_space<any>> -> memref<1x16x16xf32, #tpu.memory_space<any>>
      %c9_i32 = arith.constant 9 : i32
      %c0_i32_63 = arith.constant 0 : i32
      %c0_i32_64 = arith.constant 0 : i32
      %96 = tpu.memref_slice %arg13[%c9_i32, %c0_i32_63, %c0_i32_64] : memref<10x16x16xf32, #tpu.memory_space<vmem>> -> memref<1x16x16xf32, #tpu.memory_space<vmem>>
      %97 = tpu.memref_slice %arg15[%c2_i32] : memref<3x!tpu.dma_semaphore, #tpu.memory_space<semaphore_mem>> -> memref<1x!tpu.dma_semaphore, #tpu.memory_space<semaphore_mem>>
      %98 = tpu.memref_squeeze %97 : memref<1x!tpu.dma_semaphore, #tpu.memory_space<semaphore_mem>> -> memref<!tpu.dma_semaphore, #tpu.memory_space<semaphore_mem>>
      tpu.wait_dma2 semaphore(%98 : memref<!tpu.dma_semaphore, #tpu.memory_space<semaphore_mem>>) src(%95 : memref<1x16x16xf32, #tpu.memory_space<any>>) dst(%96 : memref<1x16x16xf32, #tpu.memory_space<vmem>>)
    } else {
    }
    %c0_20 = arith.constant 0 : index
    %c0_21 = arith.constant 0 : index
    %c0_22 = arith.constant 0 : index
    %25 = vector.load %arg13[%c0_20, %c0_21, %c0_22] : memref<10x16x16xf32, #tpu.memory_space<vmem>>, vector<10x16x16xf32>
    %26 = vector.shape_cast %25 : vector<10x16x16xf32> to vector<160x16xf32>
    %27 = arith.truncf %26 : vector<160x16xf32> to vector<160x16xbf16>
    %c0_23 = arith.constant 0 : index
    %c0_24 = arith.constant 0 : index
    %28 = vector.load %arg3[%c0_23, %c0_24] : memref<16x4xbf16, #tpu.memory_space<vmem>>, vector<16x4xbf16>
    %cst_25 = arith.constant dense<0.000000e+00> : vector<160x4xf32>
    %29 = tpu.matmul %27, %28, %cst_25 {dimension_numbers = #tpu.dot_dimension_numbers<[1], [0], [0], [1], [0, 0, 1, 1], [], []>} : vector<160x16xbf16>, vector<16x4xbf16>, vector<160x4xf32> -> vector<160x4xf32>
    %c0_26 = arith.constant 0 : index
    %c0_27 = arith.constant 0 : index
    %30 = vector.load %arg6[%c0_26, %c0_27] : memref<1x4xf32, #tpu.memory_space<vmem>>, vector<1x4xf32>
    %31 = vector.broadcast %30 : vector<1x4xf32> to vector<160x4xf32>
    %32 = arith.mulf %29, %31 : vector<160x4xf32>
    %c0_28 = arith.constant 0 : index
    %c0_29 = arith.constant 0 : index
    %33 = vector.load %arg7[%c0_28, %c0_29] : memref<1x4xf32, #tpu.memory_space<vmem>>, vector<1x4xf32>
    %34 = vector.broadcast %33 : vector<1x4xf32> to vector<160x4xf32>
    %35 = arith.addf %32, %34 : vector<160x4xf32>
    %cst_30 = arith.constant 0.000000e+00 : f32
    %36 = vector.broadcast %cst_30 : f32 to vector<160x4xf32>
    %37 = arith.maximumf %35, %36 : vector<160x4xf32>
    %38 = vector.shape_cast %37 : vector<160x4xf32> to vector<10x16x4xf32>
    %39 = arith.truncf %38 : vector<10x16x4xf32> to vector<10x16x4xbf16>
    %c0_31 = arith.constant 0 : index
    %c1 = arith.constant 1 : index
    %c0_32 = arith.constant 0 : index
    %40 = vector.load %arg14[%c0_31, %c1, %c0_32] : memref<10x18x4xbf16, #tpu.memory_space<vmem>>, vector<10x16x4xbf16>
    tpu.vector_store %arg14[%c0_31, %c1, %c0_32], %39 {strides = array<i32>} : memref<10x18x4xbf16, #tpu.memory_space<vmem>>, vector<10x16x4xbf16>,
    %c0_i32_33 = arith.constant 0 : i32
    %41 = arith.cmpi eq, %arg1, %c0_i32_33 : i32
    %42 = arith.extui %41 : i1 to i32
    %c0_i32_34 = arith.constant 0 : i32
    %43 = arith.cmpi ne, %42, %c0_i32_34 : i32
    scf.if %43 {
      %cst_60 = arith.constant 0.000000e+00 : bf16
      %93 = vector.broadcast %cst_60 : bf16 to vector<1x18x4xbf16>
      %c0_61 = arith.constant 0 : index
      %c0_62 = arith.constant 0 : index
      %c0_63 = arith.constant 0 : index
      %94 = vector.load %arg14[%c0_61, %c0_62, %c0_63] : memref<10x18x4xbf16, #tpu.memory_space<vmem>>, vector<1x18x4xbf16>
      tpu.vector_store %arg14[%c0_61, %c0_62, %c0_63], %93 {strides = array<i32>} : memref<10x18x4xbf16, #tpu.memory_space<vmem>>, vector<1x18x4xbf16>,
    } else {
    }
    %c1_i32_35 = arith.constant 1 : i32
    %44 = arith.cmpi eq, %arg1, %c1_i32_35 : i32
    %45 = arith.extui %44 : i1 to i32
    %c0_i32_36 = arith.constant 0 : i32
    %46 = arith.cmpi ne, %45, %c0_i32_36 : i32
    scf.if %46 {
      %cst_60 = arith.constant 0.000000e+00 : bf16
      %93 = vector.broadcast %cst_60 : bf16 to vector<1x18x4xbf16>
      %c9 = arith.constant 9 : index
      %c0_61 = arith.constant 0 : index
      %c0_62 = arith.constant 0 : index
      %94 = vector.load %arg14[%c9, %c0_61, %c0_62] : memref<10x18x4xbf16, #tpu.memory_space<vmem>>, vector<1x18x4xbf16>
      tpu.vector_store %arg14[%c9, %c0_61, %c0_62], %93 {strides = array<i32>} : memref<10x18x4xbf16, #tpu.memory_space<vmem>>, vector<1x18x4xbf16>,
    } else {
    }
    %c0_37 = arith.constant 0 : index
    %c0_38 = arith.constant 0 : index
    %c0_39 = arith.constant 0 : index
    %47 = vector.load %arg14[%c0_37, %c0_38, %c0_39] : memref<10x18x4xbf16, #tpu.memory_space<vmem>>, vector<10x18x4xbf16>
    %48 = vector.extract_strided_slice %47 {offsets = [0, 0, 0], sizes = [8, 16, 4], strides = [1, 1, 1]} : vector<10x18x4xbf16> to vector<8x16x4xbf16>
    %49 = vector.shape_cast %48 : vector<8x16x4xbf16> to vector<128x4xbf16>
    %50 = vector.extract_strided_slice %47 {offsets = [0, 1, 0], sizes = [8, 16, 4], strides = [1, 1, 1]} : vector<10x18x4xbf16> to vector<8x16x4xbf16>
    %51 = vector.shape_cast %50 : vector<8x16x4xbf16> to vector<128x4xbf16>
    %52 = vector.extract_strided_slice %47 {offsets = [0, 2, 0], sizes = [8, 16, 4], strides = [1, 1, 1]} : vector<10x18x4xbf16> to vector<8x16x4xbf16>
    %53 = vector.shape_cast %52 : vector<8x16x4xbf16> to vector<128x4xbf16>
    %54 = vector.extract_strided_slice %47 {offsets = [1, 0, 0], sizes = [8, 16, 4], strides = [1, 1, 1]} : vector<10x18x4xbf16> to vector<8x16x4xbf16>
    %55 = vector.shape_cast %54 : vector<8x16x4xbf16> to vector<128x4xbf16>
    %56 = vector.extract_strided_slice %47 {offsets = [1, 1, 0], sizes = [8, 16, 4], strides = [1, 1, 1]} : vector<10x18x4xbf16> to vector<8x16x4xbf16>
    %57 = vector.shape_cast %56 : vector<8x16x4xbf16> to vector<128x4xbf16>
    %58 = vector.extract_strided_slice %47 {offsets = [1, 2, 0], sizes = [8, 16, 4], strides = [1, 1, 1]} : vector<10x18x4xbf16> to vector<8x16x4xbf16>
    %59 = vector.shape_cast %58 : vector<8x16x4xbf16> to vector<128x4xbf16>
    %60 = vector.extract_strided_slice %47 {offsets = [2, 0, 0], sizes = [8, 16, 4], strides = [1, 1, 1]} : vector<10x18x4xbf16> to vector<8x16x4xbf16>
    %61 = vector.shape_cast %60 : vector<8x16x4xbf16> to vector<128x4xbf16>
    %62 = vector.extract_strided_slice %47 {offsets = [2, 1, 0], sizes = [8, 16, 4], strides = [1, 1, 1]} : vector<10x18x4xbf16> to vector<8x16x4xbf16>
    %63 = vector.shape_cast %62 : vector<8x16x4xbf16> to vector<128x4xbf16>
    %64 = vector.extract_strided_slice %47 {offsets = [2, 2, 0], sizes = [8, 16, 4], strides = [1, 1, 1]} : vector<10x18x4xbf16> to vector<8x16x4xbf16>
    %65 = vector.shape_cast %64 : vector<8x16x4xbf16> to vector<128x4xbf16>
    %66 = tpu.concatenate %49, %51, %53, %55, %57, %59, %61, %63, %65 in 1 : vector<128x4xbf16>, vector<128x4xbf16>, vector<128x4xbf16>, vector<128x4xbf16>, vector<128x4xbf16>, vector<128x4xbf16>, vector<128x4xbf16>, vector<128x4xbf16>, vector<128x4xbf16> -> vector<128x36xbf16>
    %c0_40 = arith.constant 0 : index
    %c0_41 = arith.constant 0 : index
    %67 = vector.load %arg4[%c0_40, %c0_41] : memref<36x4xbf16, #tpu.memory_space<vmem>>, vector<36x4xbf16>
    %cst_42 = arith.constant dense<0.000000e+00> : vector<128x4xf32>
    %68 = tpu.matmul %66, %67, %cst_42 {dimension_numbers = #tpu.dot_dimension_numbers<[1], [0], [0], [1], [0, 0, 1, 1], [], []>} : vector<128x36xbf16>, vector<36x4xbf16>, vector<128x4xf32> -> vector<128x4xf32>
    %c0_43 = arith.constant 0 : index
    %c0_44 = arith.constant 0 : index
    %69 = vector.load %arg8[%c0_43, %c0_44] : memref<1x4xf32, #tpu.memory_space<vmem>>, vector<1x4xf32>
    %70 = vector.broadcast %69 : vector<1x4xf32> to vector<128x4xf32>
    %71 = arith.mulf %68, %70 : vector<128x4xf32>
    %c0_45 = arith.constant 0 : index
    %c0_46 = arith.constant 0 : index
    %72 = vector.load %arg9[%c0_45, %c0_46] : memref<1x4xf32, #tpu.memory_space<vmem>>, vector<1x4xf32>
    %73 = vector.broadcast %72 : vector<1x4xf32> to vector<128x4xf32>
    %74 = arith.addf %71, %73 : vector<128x4xf32>
    %cst_47 = arith.constant 0.000000e+00 : f32
    %75 = vector.broadcast %cst_47 : f32 to vector<128x4xf32>
    %76 = arith.maximumf %74, %75 : vector<128x4xf32>
    %77 = arith.truncf %76 : vector<128x4xf32> to vector<128x4xbf16>
    %c0_48 = arith.constant 0 : index
    %c0_49 = arith.constant 0 : index
    %78 = vector.load %arg5[%c0_48, %c0_49] : memref<4x16xbf16, #tpu.memory_space<vmem>>, vector<4x16xbf16>
    %cst_50 = arith.constant dense<0.000000e+00> : vector<128x16xf32>
    %79 = tpu.matmul %77, %78, %cst_50 {dimension_numbers = #tpu.dot_dimension_numbers<[1], [0], [0], [1], [0, 0, 1, 1], [], []>} : vector<128x4xbf16>, vector<4x16xbf16>, vector<128x16xf32> -> vector<128x16xf32>
    %80 = vector.extract_strided_slice %25 {offsets = [1, 0, 0], sizes = [8, 16, 16], strides = [1, 1, 1]} : vector<10x16x16xf32> to vector<8x16x16xf32>
    %81 = vector.shape_cast %80 : vector<8x16x16xf32> to vector<128x16xf32>
    %c0_51 = arith.constant 0 : index
    %c0_52 = arith.constant 0 : index
    %82 = vector.load %arg10[%c0_51, %c0_52] : memref<1x16xf32, #tpu.memory_space<vmem>>, vector<1x16xf32>
    %83 = vector.broadcast %82 : vector<1x16xf32> to vector<128x16xf32>
    %84 = arith.mulf %79, %83 : vector<128x16xf32>
    %c0_53 = arith.constant 0 : index
    %c0_54 = arith.constant 0 : index
    %85 = vector.load %arg11[%c0_53, %c0_54] : memref<1x16xf32, #tpu.memory_space<vmem>>, vector<1x16xf32>
    %86 = vector.broadcast %85 : vector<1x16xf32> to vector<128x16xf32>
    %87 = arith.addf %84, %86 : vector<128x16xf32>
    %88 = arith.addf %87, %81 : vector<128x16xf32>
    %cst_55 = arith.constant 0.000000e+00 : f32
    %89 = vector.broadcast %cst_55 : f32 to vector<128x16xf32>
    %90 = arith.maximumf %88, %89 : vector<128x16xf32>
    %91 = vector.shape_cast %90 : vector<128x16xf32> to vector<1x8x16x16xf32>
    %c0_56 = arith.constant 0 : index
    %c0_57 = arith.constant 0 : index
    %c0_58 = arith.constant 0 : index
    %c0_59 = arith.constant 0 : index
    %92 = vector.load %arg12[%c0_56, %c0_57, %c0_58, %c0_59] : memref<1x8x16x16xf32, #tpu.memory_space<vmem>>, vector<1x8x16x16xf32>
    tpu.vector_store %arg12[%c0_56, %c0_57, %c0_58, %c0_59], %91 {strides = array<i32>} : memref<1x8x16x16xf32, #tpu.memory_space<vmem>>, vector<1x8x16x16xf32>,
    return
  }
  func.func @transform_1(%arg0: i32, %arg1: i32) -> (i32, i32) {
    %c0_i32 = arith.constant 0 : i32
    %c0_i32_0 = arith.constant 0 : i32
    %c0_i32_1 = arith.constant 0 : i32
    return %c0_i32, %c0_i32_0 : i32, i32
  }
  func.func @transform_2(%arg0: i32, %arg1: i32) -> (i32, i32) {
    %c0_i32 = arith.constant 0 : i32
    %c0_i32_0 = arith.constant 0 : i32
    %c0_i32_1 = arith.constant 0 : i32
    return %c0_i32, %c0_i32_0 : i32, i32
  }
  func.func @transform_3(%arg0: i32, %arg1: i32) -> (i32, i32) {
    %c0_i32 = arith.constant 0 : i32
    %c0_i32_0 = arith.constant 0 : i32
    %c0_i32_1 = arith.constant 0 : i32
    return %c0_i32, %c0_i32_0 : i32, i32
  }
  func.func @transform_4(%arg0: i32, %arg1: i32) -> (i32, i32) {
    %c0_i32 = arith.constant 0 : i32
    %c0_i32_0 = arith.constant 0 : i32
    %c0_i32_1 = arith.constant 0 : i32
    return %c0_i32, %c0_i32_0 : i32, i32
  }
  func.func @transform_5(%arg0: i32, %arg1: i32) -> (i32, i32) {
    %c0_i32 = arith.constant 0 : i32
    %c0_i32_0 = arith.constant 0 : i32
    %c0_i32_1 = arith.constant 0 : i32
    return %c0_i32, %c0_i32_0 : i32, i32
  }
  func.func @transform_6(%arg0: i32, %arg1: i32) -> (i32, i32) {
    %c0_i32 = arith.constant 0 : i32
    %c0_i32_0 = arith.constant 0 : i32
    %c0_i32_1 = arith.constant 0 : i32
    return %c0_i32, %c0_i32_0 : i32, i32
  }
  func.func @transform_7(%arg0: i32, %arg1: i32) -> (i32, i32) {
    %c0_i32 = arith.constant 0 : i32
    %c0_i32_0 = arith.constant 0 : i32
    %c0_i32_1 = arith.constant 0 : i32
    return %c0_i32, %c0_i32_0 : i32, i32
  }
  func.func @transform_8(%arg0: i32, %arg1: i32) -> (i32, i32) {
    %c0_i32 = arith.constant 0 : i32
    %c0_i32_0 = arith.constant 0 : i32
    %c0_i32_1 = arith.constant 0 : i32
    return %c0_i32, %c0_i32_0 : i32, i32
  }
  func.func @transform_9(%arg0: i32, %arg1: i32) -> (i32, i32) {
    %c0_i32 = arith.constant 0 : i32
    %c0_i32_0 = arith.constant 0 : i32
    %c0_i32_1 = arith.constant 0 : i32
    return %c0_i32, %c0_i32_0 : i32, i32
  }
  func.func @transform_10(%arg0: i32, %arg1: i32) -> (i32, i32, i32, i32) {
    %c0_i32 = arith.constant 0 : i32
    %c0_i32_0 = arith.constant 0 : i32
    %c0_i32_1 = arith.constant 0 : i32
    return %arg0, %arg1, %c0_i32, %c0_i32_0 : i32, i32, i32, i32
  }
}

</mosaic_0001>

<llo_original>
// kernel: tpu_custom_call.1
$region0: #{tpu_custom_call.1}
  #allocation0 [shape = 'u32[]', space=smem, size = 0x4, offset = 0x4, fixed_abs, tag = 'smem constant byte address 0x4 - core index']
  #allocation1 [shape = 'u32[144,128]{1,0:T(1,128)}', space=vmem, size = 0x12000, scoped, tag = 'internal scratch']
  #allocation2 [shape = 'f32[10,16,16]{2,1,0:T(8,128)}', space=vmem, size = 0x14000, scoped, tag = 'scratch operand']
  #allocation3 [shape = 'bf16[10,18,4]{2,1,0:T(8,128)(2,1)}', space=vmem, size = 0xf000, scoped, tag = 'scratch operand']
  #allocation4 [shape = 's32[3]{0}', space=sflag, size = 0xc, scoped, tag = 'scratch operand']
  #allocation7 [shape = 's32[]', space=sflag, size = 0x4, offset = 0, fixed_abs, tag = 'sflag constant byte address 0x0 - dummy sync flag']
  #allocation8 [shape = 's32[]', space=sflag, size = 0x4, offset = 0, fixed_abs, tag = 'sflag constant byte address 0x0 - dummy sync flag']
  #allocation9 [shape = 'u32[]', space=smem, size = 0x4, offset = 0x44, fixed_abs, tag = 'smem constant byte address 0x44 - assertion arg 0']
  #allocation10 [shape = 'u32[]', space=smem, size = 0x4, offset = 0x48, fixed_abs, tag = 'smem constant byte address 0x48 - assertion arg 1']
  #allocation11 [shape = 's32[]', space=sflag, size = 0x4, offset = 0, fixed_abs, tag = 'sflag constant byte address 0x0 - dummy sync flag']
  #allocation12 [shape = 's32[]', space=sflag, size = 0x4, offset = 0, fixed_abs, tag = 'sflag constant byte address 0x0 - dummy sync flag']
  #allocation13 [shape = 's32[]', space=sflag, size = 0x4, offset = 0, fixed_abs, tag = 'sflag constant byte address 0x0 - dummy sync flag']
  #allocation14 [shape = 's32[]', space=sflag, size = 0x4, offset = 0, fixed_abs, tag = 'sflag constant byte address 0x0 - dummy sync flag']
  %s0 = inlined_call_operand.hbm [shape: f32[2,16,16,16], index: 0, kind: input, shape index: {}]
  %s1 = inlined_call_operand.vmem [shape: bf16[16,4], index: 1, kind: input, shape index: {}]
  %s2 = inlined_call_operand.vmem [shape: bf16[36,4], index: 2, kind: input, shape index: {}]
  %s3 = inlined_call_operand.vmem [shape: bf16[4,16], index: 3, kind: input, shape index: {}]
  %s4 = inlined_call_operand.vmem [shape: f32[1,4], index: 4, kind: input, shape index: {}]
  %s5 = inlined_call_operand.vmem [shape: f32[1,4], index: 5, kind: input, shape index: {}]
  %s6 = inlined_call_operand.vmem [shape: f32[1,4], index: 6, kind: input, shape index: {}]
  %s7 = inlined_call_operand.vmem [shape: f32[1,4], index: 7, kind: input, shape index: {}]
  %s8 = inlined_call_operand.vmem [shape: f32[1,16], index: 8, kind: input, shape index: {}]
  %s9 = inlined_call_operand.vmem [shape: f32[1,16], index: 9, kind: input, shape index: {}]
  %s10 = inlined_call_operand.hbm [shape: f32[2,16,16,16], index: 10, kind: output, shape index: {}]
  %s11 = sld [smem:[#allocation0]]
  $region105: #{tpu_custom_call.1} parent=0
    _
  %s13 = ssub.s32 1, %s11
  %s14 = scalar_select 0, %s13, %s11
  $region1: #{tpu_custom_call.1} parent=0
    #allocation5 [shape = 'u8[131072]{0}', space=vmem, size = 0x20000, scoped, tag = 'output window, operand 0']
    #allocation6 [shape = 's32[2]{0}', space=sflag, size = 0x8, scoped, tag = 'scoped memory for tpu_custom_call.1']
    %15 = vsyncpa [#allocation6], 0
    %s16 = scalar_lea.sflag [#allocation6], 1
    %17 = vsyncpa %s16, 0
    loop: start=0, step=1, limit=6
    $region2: #{tpu_custom_call.1} parent=1 // loop_pre_header
      _
    $region3: #{tpu_custom_call.1} parent=1 // loop_header
      %s19 = sphi 0, %s23
      %p20 = scmp.ge.s32.totalorder %s19, 6
      %s26 = sphi 0, %s38
      %s27 = sphi 0, %s34
      %s28 = sphi 0, %s26
      %s29 = sphi 0, %s27
      %s30 = sphi 0, %s28
      %s31 = sphi 0, %s29
      %s39 = sphi 0, %s39
      %s41 = sphi 0, %s39
      %s42 = sphi 0, %s41
      %s56 = sphi 0, %s42
      %s60 = sphi 0, %s60
      %s62 = sphi 0, %s60
      %s63 = sphi 0, %s62
      %s77 = sphi 0, %s63
      %s81 = sphi 0, %s81
      %s83 = sphi 0, %s81
      %s84 = sphi 0, %s83
      %s98 = sphi 0, %s84
      %s102 = sphi 0, %s102
      %s104 = sphi 0, %s102
      %s105 = sphi 0, %s104
      %s119 = sphi 0, %s105
      %s123 = sphi 0, %s123
      %s125 = sphi 0, %s123
      %s126 = sphi 0, %s125
      %s140 = sphi 0, %s126
      %s144 = sphi 0, %s144
      %s146 = sphi 0, %s144
      %s147 = sphi 0, %s146
      %s161 = sphi 0, %s147
      %s165 = sphi 0, %s165
      %s167 = sphi 0, %s165
      %s168 = sphi 0, %s167
      %s182 = sphi 0, %s168
      %s186 = sphi 0, %s186
      %s188 = sphi 0, %s186
      %s189 = sphi 0, %s188
      %s203 = sphi 0, %s189
      %s207 = sphi 0, %s207
      %s209 = sphi 0, %s207
      %s210 = sphi 0, %s209
      %s224 = sphi 0, %s210
      %s232 = sphi 0, %s234
      %s235 = sphi 0, %s232
      %s236 = sphi 0, %s235
      %s252 = sphi 0, %s236
    $region4: #{tpu_custom_call.1} parent=1 // loop_header_branch
      %22 = sbr.rel (%p20) target = $region8
    $region5: #{tpu_custom_call.1} parent=1 // loop_body
      %s24 = ssub.s32 %s19, 1
      %s25 = ssub.s32 %s19, 2
      %s32 = sadd.s32 1, %s27
      %p33 = scmp.ge.s32.totalorder %s32, 2
      %s34 = scalar_select %p33, 0, %s32
      %s35 = sadd.s32 1, %s26
      %s36 = scalar_select %p33, %s35, %s26
      %p37 = scmp.ge.s32.totalorder %s36, 2
      %s38 = scalar_select %p37, 0, %s36
      %s40 = sadd.s32 %s39, 1
      %p43 = scmp.eq.s32.totalorder %s19, 3
      %p44 = scmp.ne.s32.totalorder %s39, %s41
      %p45 = scmp.eq.s32.totalorder %s19, 0
      %p46 = por %p44, %p45
      %p47 = scmp.ne.s32.totalorder %s39, %s41
      %p48 = scmp.eq.s32.totalorder %s24, 3
      %p49 = por %p47, %p48
      %p50 = scmp.ne.s32.totalorder %s41, %s42
      %p51 = scmp.eq.s32.totalorder %s24, 0
      %p52 = por %p50, %p51
      %p53 = scmp.ne.s32.totalorder %s41, %s42
      %p54 = scmp.eq.s32.totalorder %s25, 3
      %p55 = por %p53, %p54
      %p57 = scmp.ne.s32.totalorder %s42, %s56
      %p58 = scmp.eq.s32.totalorder %s25, 0
      %p59 = por %p57, %p58
      %s61 = sadd.s32 %s60, 1
      %p64 = scmp.eq.s32.totalorder %s19, 3
      %p65 = scmp.ne.s32.totalorder %s60, %s62
      %p66 = scmp.eq.s32.totalorder %s19, 0
      %p67 = por %p65, %p66
      %p68 = scmp.ne.s32.totalorder %s60, %s62
      %p69 = scmp.eq.s32.totalorder %s24, 3
      %p70 = por %p68, %p69
      %p71 = scmp.ne.s32.totalorder %s62, %s63
      %p72 = scmp.eq.s32.totalorder %s24, 0
      %p73 = por %p71, %p72
      %p74 = scmp.ne.s32.totalorder %s62, %s63
      %p75 = scmp.eq.s32.totalorder %s25, 3
      %p76 = por %p74, %p75
      %p78 = scmp.ne.s32.totalorder %s63, %s77
      %p79 = scmp.eq.s32.totalorder %s25, 0
      %p80 = por %p78, %p79
      %s82 = sadd.s32 %s81, 1
      %p85 = scmp.eq.s32.totalorder %s19, 3
      %p86 = scmp.ne.s32.totalorder %s81, %s83
      %p87 = scmp.eq.s32.totalorder %s19, 0
      %p88 = por %p86, %p87
      %p89 = scmp.ne.s32.totalorder %s81, %s83
      %p90 = scmp.eq.s32.totalorder %s24, 3
      %p91 = por %p89, %p90
      %p92 = scmp.ne.s32.totalorder %s83, %s84
      %p93 = scmp.eq.s32.totalorder %s24, 0
      %p94 = por %p92, %p93
      %p95 = scmp.ne.s32.totalorder %s83, %s84
      %p96 = scmp.eq.s32.totalorder %s25, 3
      %p97 = por %p95, %p96
      %p99 = scmp.ne.s32.totalorder %s84, %s98
      %p100 = scmp.eq.s32.totalorder %s25, 0
      %p101 = por %p99, %p100
      %s103 = sadd.s32 %s102, 1
      %p106 = scmp.eq.s32.totalorder %s19, 3
      %p107 = scmp.ne.s32.totalorder %s102, %s104
      %p108 = scmp.eq.s32.totalorder %s19, 0
      %p109 = por %p107, %p108
      %p110 = scmp.ne.s32.totalorder %s102, %s104
      %p111 = scmp.eq.s32.totalorder %s24, 3
      %p112 = por %p110, %p111
      %p113 = scmp.ne.s32.totalorder %s104, %s105
      %p114 = scmp.eq.s32.totalorder %s24, 0
      %p115 = por %p113, %p114
      %p116 = scmp.ne.s32.totalorder %s104, %s105
      %p117 = scmp.eq.s32.totalorder %s25, 3
      %p118 = por %p116, %p117
      %p120 = scmp.ne.s32.totalorder %s105, %s119
      %p121 = scmp.eq.s32.totalorder %s25, 0
      %p122 = por %p120, %p121
      %s124 = sadd.s32 %s123, 1
      %p127 = scmp.eq.s32.totalorder %s19, 3
      %p128 = scmp.ne.s32.totalorder %s123, %s125
      %p129 = scmp.eq.s32.totalorder %s19, 0
      %p130 = por %p128, %p129
      %p131 = scmp.ne.s32.totalorder %s123, %s125
      %p132 = scmp.eq.s32.totalorder %s24, 3
      %p133 = por %p131, %p132
      %p134 = scmp.ne.s32.totalorder %s125, %s126
      %p135 = scmp.eq.s32.totalorder %s24, 0
      %p136 = por %p134, %p135
      %p137 = scmp.ne.s32.totalorder %s125, %s126
      %p138 = scmp.eq.s32.totalorder %s25, 3
      %p139 = por %p137, %p138
      %p141 = scmp.ne.s32.totalorder %s126, %s140
      %p142 = scmp.eq.s32.totalorder %s25, 0
      %p143 = por %p141, %p142
      %s145 = sadd.s32 %s144, 1
      %p148 = scmp.eq.s32.totalorder %s19, 3
      %p149 = scmp.ne.s32.totalorder %s144, %s146
      %p150 = scmp.eq.s32.totalorder %s19, 0
      %p151 = por %p149, %p150
      %p152 = scmp.ne.s32.totalorder %s144, %s146
      %p153 = scmp.eq.s32.totalorder %s24, 3
      %p154 = por %p152, %p153
      %p155 = scmp.ne.s32.totalorder %s146, %s147
      %p156 = scmp.eq.s32.totalorder %s24, 0
      %p157 = por %p155, %p156
      %p158 = scmp.ne.s32.totalorder %s146, %s147
      %p159 = scmp.eq.s32.totalorder %s25, 3
      %p160 = por %p158, %p159
      %p162 = scmp.ne.s32.totalorder %s147, %s161
      %p163 = scmp.eq.s32.totalorder %s25, 0
      %p164 = por %p162, %p163
      %s166 = sadd.s32 %s165, 1
      %p169 = scmp.eq.s32.totalorder %s19, 3
      %p170 = scmp.ne.s32.totalorder %s165, %s167
      %p171 = scmp.eq.s32.totalorder %s19, 0
      %p172 = por %p170, %p171
      %p173 = scmp.ne.s32.totalorder %s165, %s167
      %p174 = scmp.eq.s32.totalorder %s24, 3
      %p175 = por %p173, %p174
      %p176 = scmp.ne.s32.totalorder %s167, %s168
      %p177 = scmp.eq.s32.totalorder %s24, 0
      %p178 = por %p176, %p177
      %p179 = scmp.ne.s32.totalorder %s167, %s168
      %p180 = scmp.eq.s32.totalorder %s25, 3
      %p181 = por %p179, %p180
      %p183 = scmp.ne.s32.totalorder %s168, %s182
      %p184 = scmp.eq.s32.totalorder %s25, 0
      %p185 = por %p183, %p184
      %s187 = sadd.s32 %s186, 1
      %p190 = scmp.eq.s32.totalorder %s19, 3
      %p191 = scmp.ne.s32.totalorder %s186, %s188
      %p192 = scmp.eq.s32.totalorder %s19, 0
      %p193 = por %p191, %p192
      %p194 = scmp.ne.s32.totalorder %s186, %s188
      %p195 = scmp.eq.s32.totalorder %s24, 3
      %p196 = por %p194, %p195
      %p197 = scmp.ne.s32.totalorder %s188, %s189
      %p198 = scmp.eq.s32.totalorder %s24, 0
      %p199 = por %p197, %p198
      %p200 = scmp.ne.s32.totalorder %s188, %s189
      %p201 = scmp.eq.s32.totalorder %s25, 3
      %p202 = por %p200, %p201
      %p204 = scmp.ne.s32.totalorder %s189, %s203
      %p205 = scmp.eq.s32.totalorder %s25, 0
      %p206 = por %p204, %p205
      %s208 = sadd.s32 %s207, 1
      %p211 = scmp.eq.s32.totalorder %s19, 3
      %p212 = scmp.ne.s32.totalorder %s207, %s209
      %p213 = scmp.eq.s32.totalorder %s19, 0
      %p214 = por %p212, %p213
      %p215 = scmp.ne.s32.totalorder %s207, %s209
      %p216 = scmp.eq.s32.totalorder %s24, 3
      %p217 = por %p215, %p216
      %p218 = scmp.ne.s32.totalorder %s209, %s210
      %p219 = scmp.eq.s32.totalorder %s24, 0
      %p220 = por %p218, %p219
      %p221 = scmp.ne.s32.totalorder %s209, %s210
      %p222 = scmp.eq.s32.totalorder %s25, 3
      %p223 = por %p221, %p222
      %p225 = scmp.ne.s32.totalorder %s210, %s224
      %p226 = scmp.eq.s32.totalorder %s25, 0
      %p227 = por %p225, %p226
      %s228 = ssub.s32 %s26, %s38
      %s229 = ssub.s32 %s27, %s34
      %s230 = sor.u32 %s228, %s229
      %p231 = scmp.eq.s32.totalorder %s230, 0
      %s233 = sadd.s32 %s232, 1
      %s234 = scalar_select %p231, %s232, %s233
      %p237 = pneg %p231
      %p238 = scmp.eq.s32.totalorder %s19, 3
      %p239 = por %p237, %p238
      %p240 = scmp.ne.s32.totalorder %s232, %s235
      %p241 = scmp.eq.s32.totalorder %s19, 0
      %p242 = por %p240, %p241
      %p243 = scmp.ne.s32.totalorder %s232, %s235
      %p244 = scmp.eq.s32.totalorder %s24, 3
      %p245 = por %p243, %p244
      %p246 = scmp.ne.s32.totalorder %s235, %s236
      %p247 = scmp.eq.s32.totalorder %s24, 0
      %p248 = por %p246, %p247
      %p249 = scmp.ne.s32.totalorder %s235, %s236
      %p250 = scmp.eq.s32.totalorder %s25, 3
      %p251 = por %p249, %p250
      %p253 = scmp.ne.s32.totalorder %s236, %s252
      %p254 = scmp.eq.s32.totalorder %s25, 0
      %p255 = por %p253, %p254
      %p256 = scmp.le.s32.totalorder 1, %s19
      %p257 = scmp.lt.s32.totalorder %s19, 5
      %p258 = pnand %p256, %p257
      %p259 = pneg %p258
      // Predicated region
      $region9: #{tpu_custom_call.1} parent=5 // pred_check
        _
      $region10: #{tpu_custom_call.1} parent=5 // pred_check_branch
        %261 = sbr.rel (%p258) target = $region12
      $region11: #{tpu_custom_call.1} parent=5 // pred_region
        %s262 = ssub.s32 %s19, 1
        // Predicated region
        $region13: #{tpu_custom_call.1} parent=11 // pred_check
          %p263 = pneg %p52
        $region14: #{tpu_custom_call.1} parent=11 // pred_check_branch
          %265 = sbr.rel (%p263) target = $region16
        $region15: #{tpu_custom_call.1} parent=11 // pred_region
          _
        $region16: #{tpu_custom_call.1} parent=11 // pred_fallthru
          _
        // Predicated region
        $region17: #{tpu_custom_call.1} parent=11 // pred_check
          %p266 = pneg %p73
        $region18: #{tpu_custom_call.1} parent=11 // pred_check_branch
          %268 = sbr.rel (%p266) target = $region20
        $region19: #{tpu_custom_call.1} parent=11 // pred_region
          _
        $region20: #{tpu_custom_call.1} parent=11 // pred_fallthru
          _
        // Predicated region
        $region21: #{tpu_custom_call.1} parent=11 // pred_check
          %p269 = pneg %p94
        $region22: #{tpu_custom_call.1} parent=11 // pred_check_branch
          %271 = sbr.rel (%p269) target = $region24
        $region23: #{tpu_custom_call.1} parent=11 // pred_region
          _
        $region24: #{tpu_custom_call.1} parent=11 // pred_fallthru
          _
        // Predicated region
        $region25: #{tpu_custom_call.1} parent=11 // pred_check
          %p272 = pneg %p115
        $region26: #{tpu_custom_call.1} parent=11 // pred_check_branch
          %274 = sbr.rel (%p272) target = $region28
        $region27: #{tpu_custom_call.1} parent=11 // pred_region
          _
        $region28: #{tpu_custom_call.1} parent=11 // pred_fallthru
          _
        // Predicated region
        $region29: #{tpu_custom_call.1} parent=11 // pred_check
          %p275 = pneg %p136
        $region30: #{tpu_custom_call.1} parent=11 // pred_check_branch
          %277 = sbr.rel (%p275) target = $region32
        $region31: #{tpu_custom_call.1} parent=11 // pred_region
          _
        $region32: #{tpu_custom_call.1} parent=11 // pred_fallthru
          _
        // Predicated region
        $region33: #{tpu_custom_call.1} parent=11 // pred_check
          %p278 = pneg %p157
        $region34: #{tpu_custom_call.1} parent=11 // pred_check_branch
          %280 = sbr.rel (%p278) target = $region36
        $region35: #{tpu_custom_call.1} parent=11 // pred_region
          _
        $region36: #{tpu_custom_call.1} parent=11 // pred_fallthru
          _
        // Predicated region
        $region37: #{tpu_custom_call.1} parent=11 // pred_check
          %p281 = pneg %p178
        $region38: #{tpu_custom_call.1} parent=11 // pred_check_branch
          %283 = sbr.rel (%p281) target = $region40
        $region39: #{tpu_custom_call.1} parent=11 // pred_region
          _
        $region40: #{tpu_custom_call.1} parent=11 // pred_fallthru
          _
        // Predicated region
        $region41: #{tpu_custom_call.1} parent=11 // pred_check
          %p284 = pneg %p199
        $region42: #{tpu_custom_call.1} parent=11 // pred_check_branch
          %286 = sbr.rel (%p284) target = $region44
        $region43: #{tpu_custom_call.1} parent=11 // pred_region
          _
        $region44: #{tpu_custom_call.1} parent=11 // pred_fallthru
          _
        // Predicated region
        $region45: #{tpu_custom_call.1} parent=11 // pred_check
          %p287 = pneg %p220
        $region46: #{tpu_custom_call.1} parent=11 // pred_check_branch
          %289 = sbr.rel (%p287) target = $region48
        $region47: #{tpu_custom_call.1} parent=11 // pred_region
          _
        $region48: #{tpu_custom_call.1} parent=11 // pred_fallthru
          _
      $region12: #{tpu_custom_call.1} parent=5 // pred_fallthru
        _
      %p290 = scmp.lt.s32.totalorder %s19, 4
      // Predicated region
      $region49: #{tpu_custom_call.1} parent=5 // pred_check
        %p291 = pneg %p290
      $region50: #{tpu_custom_call.1} parent=5 // pred_check_branch
        %293 = sbr.rel (%p291) target = $region52
      $region51: #{tpu_custom_call.1} parent=5 // pred_region
        _
      $region52: #{tpu_custom_call.1} parent=5 // pred_fallthru
        _
      %p294 = scmp.le.s32.totalorder 1, %s19
      %p295 = scmp.lt.s32.totalorder %s19, 5
      %p296 = pnand %p294, %p295
      %p297 = pneg %p296
      // Predicated region
      $region53: #{tpu_custom_call.1} parent=5 // pred_check
        _
      $region54: #{tpu_custom_call.1} parent=5 // pred_check_branch
        %299 = sbr.rel (%p296) target = $region56
      $region55: #{tpu_custom_call.1} parent=5 // pred_region
        %s300 = ssub.s32 %s19, 1
        %p301 = pneg %p52
        %p302 = pneg %p49
        %p303 = pneg %p73
        %p304 = pneg %p70
        %p305 = pneg %p94
        %p306 = pneg %p91
        %p307 = pneg %p115
        %p308 = pneg %p112
        %p309 = pneg %p136
        %p310 = pneg %p133
        %p311 = pneg %p157
        %p312 = pneg %p154
        %p313 = pneg %p178
        %p314 = pneg %p175
        %p315 = pneg %p199
        %p316 = pneg %p196
        %p317 = pneg %p220
        %p318 = pneg %p217
        %p319 = pneg %p248
        %p320 = pneg %p245
        %s321 = sand.u32 %s235, 1
        %s322 = scalar_lea.sflag [#allocation6], %s321
        %s323 = sand.u32 %s235, 1
        %s324 = smul.addr %s323, 128
        %s325 = scalar_lea.vmem [#allocation5], %s324
        %s326 = smul.u32 8, %s29
        %s328 = smul.u32 %s29, 8
        %s329 = smul.u32 %s328, 16
        %s330 = smul.u32 %s28, 256
        %s331 = sadd.s32 %s329, %s330
        %s332 = smul.addr %s331, 16
        %s333 = scalar_lea.hbm %s0, %s332
        %s334 = scalar_lea.vmem [#allocation2], 16
        // Predicated region
        $region57: #{tpu_custom_call.1} parent=55 // pred_check
          _
        $region58: #{tpu_custom_call.1} parent=55 // pred_check_branch
          %336 = sbr.rel target = $region60
        $region59: #{tpu_custom_call.1} parent=55 // pred_region
          %337 = sst [smem:[#allocation9]] [#allocation8]
          %338 = sst [smem:[#allocation10]] [#allocation7]
        $region60: #{tpu_custom_call.1} parent=55 // pred_fallthru
          _
        %340 = shalt.err (0)
        %s342 = sshll.u32 %s334, 4
        %s343 = int_to_ptr.vmem [resolvable:$true] %s342
        %345 = dma.hbm_to_vmem [thread:$0]  %s333, 2048, %s343, [#allocation4]
        %p346 = scmp.gt.s32.totalorder %s29, 0
        // Predicated region
        $region61: #{tpu_custom_call.1} parent=55 // pred_check
          %p347 = pneg %p346
        $region62: #{tpu_custom_call.1} parent=55 // pred_check_branch
          %349 = sbr.rel (%p347) target = $region64
        $region63: #{tpu_custom_call.1} parent=55 // pred_region
          %s350 = ssub.s32 %s328, 1
          %s351 = smul.u32 %s350, 16
          %s352 = sadd.s32 %s351, %s330
          %s353 = smul.addr %s352, 16
          %s354 = scalar_lea.hbm %s0, %s353
          %s355 = scalar_lea.sflag [#allocation4], 1
          // Predicated region
          $region65: #{tpu_custom_call.1} parent=63 // pred_check
            _
          $region66: #{tpu_custom_call.1} parent=63 // pred_check_branch
            %357 = sbr.rel target = $region68
          $region67: #{tpu_custom_call.1} parent=63 // pred_region
            %358 = sst [smem:[#allocation9]] [#allocation12]
            %359 = sst [smem:[#allocation10]] [#allocation11]
          $region68: #{tpu_custom_call.1} parent=63 // pred_fallthru
            _
          %361 = shalt.err (0)
          %s363 = sshll.u32 [#allocation2], 4
          %s364 = int_to_ptr.vmem [resolvable:$true] %s363
          %366 = dma.hbm_to_vmem [thread:$0]  %s354, 256, %s364, %s355
        $region64: #{tpu_custom_call.1} parent=55 // pred_fallthru
          _
        %p367 = scmp.lt.s32.totalorder %s29, 1
        // Predicated region
        $region69: #{tpu_custom_call.1} parent=55 // pred_check
          %p368 = pneg %p367
        $region70: #{tpu_custom_call.1} parent=55 // pred_check_branch
          %370 = sbr.rel (%p368) target = $region72
        $region71: #{tpu_custom_call.1} parent=55 // pred_region
          %s371 = sadd.s32 %s328, 8
          %s372 = smul.u32 %s371, 16
          %s373 = sadd.s32 %s372, %s330
          %s374 = smul.addr %s373, 16
          %s375 = scalar_lea.hbm %s0, %s374
          %s376 = scalar_lea.vmem [#allocation2], 144
          %s377 = scalar_lea.sflag [#allocation4], 2
          // Predicated region
          $region73: #{tpu_custom_call.1} parent=71 // pred_check
            _
          $region74: #{tpu_custom_call.1} parent=71 // pred_check_branch
            %379 = sbr.rel target = $region76
          $region75: #{tpu_custom_call.1} parent=71 // pred_region
            %380 = sst [smem:[#allocation9]] [#allocation14]
            %381 = sst [smem:[#allocation10]] [#allocation13]
          $region76: #{tpu_custom_call.1} parent=71 // pred_fallthru
            _
          %383 = shalt.err (0)
          %s385 = sshll.u32 %s376, 4
          %s386 = int_to_ptr.vmem [resolvable:$true] %s385
          %388 = dma.hbm_to_vmem [thread:$0]  %s375, 256, %s386, %s377
        $region72: #{tpu_custom_call.1} parent=55 // pred_fallthru
          _
        %vm389 = vcmask 27648
        %390 = vst.msk [vmem:[#allocation3] sm:$0xf] %vm389, 0
        %391 = vst.msk [vmem:[#allocation3 + $0x4] sm:$0xf] %vm389, 0
        %vm392 = vcmask 24576
        %393 = vst.msk [vmem:[#allocation3 + $0x8] sm:$0x1] %vm392, 0
        %394 = vst.msk [vmem:[#allocation3 + $0xc] sm:$0xf] %vm389, 0
        %395 = vst.msk [vmem:[#allocation3 + $0x10] sm:$0xf] %vm389, 0
        %396 = vst.msk [vmem:[#allocation3 + $0x14] sm:$0x1] %vm392, 0
        %397 = vst.msk [vmem:[#allocation3 + $0x18] sm:$0xf] %vm389, 0
        %398 = vst.msk [vmem:[#allocation3 + $0x1c] sm:$0xf] %vm389, 0
        %399 = vst.msk [vmem:[#allocation3 + $0x20] sm:$0x1] %vm392, 0
        %400 = vst.msk [vmem:[#allocation3 + $0x24] sm:$0xf] %vm389, 0
        %401 = vst.msk [vmem:[#allocation3 + $0x28] sm:$0xf] %vm389, 0
        %402 = vst.msk [vmem:[#allocation3 + $0x2c] sm:$0x1] %vm392, 0
        %403 = vst.msk [vmem:[#allocation3 + $0x30] sm:$0xf] %vm389, 0
        %404 = vst.msk [vmem:[#allocation3 + $0x34] sm:$0xf] %vm389, 0
        %405 = vst.msk [vmem:[#allocation3 + $0x38] sm:$0x1] %vm392, 0
        %406 = vst.msk [vmem:[#allocation3 + $0x3c] sm:$0xf] %vm389, 0
        %407 = vst.msk [vmem:[#allocation3 + $0x40] sm:$0xf] %vm389, 0
        %408 = vst.msk [vmem:[#allocation3 + $0x44] sm:$0x1] %vm392, 0
        %409 = vst.msk [vmem:[#allocation3 + $0x48] sm:$0xf] %vm389, 0
        %410 = vst.msk [vmem:[#allocation3 + $0x4c] sm:$0xf] %vm389, 0
        %411 = vst.msk [vmem:[#allocation3 + $0x50] sm:$0x1] %vm392, 0
        %412 = vst.msk [vmem:[#allocation3 + $0x54] sm:$0xf] %vm389, 0
        %413 = vst.msk [vmem:[#allocation3 + $0x58] sm:$0xf] %vm389, 0
        %414 = vst.msk [vmem:[#allocation3 + $0x5c] sm:$0x1] %vm392, 0
        %415 = vst.msk [vmem:[#allocation3 + $0x60] sm:$0xf] %vm389, 0
        %416 = vst.msk [vmem:[#allocation3 + $0x64] sm:$0xf] %vm389, 0
        %417 = vst.msk [vmem:[#allocation3 + $0x68] sm:$0x1] %vm392, 0
        %418 = vst.msk [vmem:[#allocation3 + $0x6c] sm:$0xf] %vm389, 0
        %419 = vst.msk [vmem:[#allocation3 + $0x70] sm:$0xf] %vm389, 0
        %420 = vst.msk [vmem:[#allocation3 + $0x74] sm:$0x1] %vm392, 0
        %s421 = smul.u32 8, 16
        %s422 = smul.u32 %s421, 1
        %s423 = sshll.u32 %s422, 4
        %424 = dma.done [#allocation4], %s423
        // Predicated region
        $region77: #{tpu_custom_call.1} parent=55 // pred_check
          %p425 = pneg %p346
        $region78: #{tpu_custom_call.1} parent=55 // pred_check_branch
          %427 = sbr.rel (%p425) target = $region80
        $region79: #{tpu_custom_call.1} parent=55 // pred_region
          %s428 = scalar_lea.sflag [#allocation4], 1
          %s429 = smul.u32 1, 16
          %s430 = smul.u32 %s429, 1
          %s431 = sshll.u32 %s430, 4
          %432 = dma.done %s428, %s431
        $region80: #{tpu_custom_call.1} parent=55 // pred_fallthru
          _
        // Predicated region
        $region81: #{tpu_custom_call.1} parent=55 // pred_check
          %p433 = pneg %p367
        $region82: #{tpu_custom_call.1} parent=55 // pred_check_branch
          %435 = sbr.rel (%p433) target = $region84
        $region83: #{tpu_custom_call.1} parent=55 // pred_region
          %s436 = scalar_lea.sflag [#allocation4], 2
          %s437 = smul.u32 1, 16
          %s438 = smul.u32 %s437, 1
          %s439 = sshll.u32 %s438, 4
          %440 = dma.done %s436, %s439
        $region84: #{tpu_custom_call.1} parent=55 // pred_fallthru
          _
        %v441 = vld [vmem:[#allocation2] sm:$0xff]
        %v442 = vld [vmem:[#allocation2 + $0x8] sm:$0xff]
        %v443 = vld [vmem:[#allocation2 + $0x10] sm:$0xff]
        %v444 = vld [vmem:[#allocation2 + $0x18] sm:$0xff]
        %v445 = vld [vmem:[#allocation2 + $0x20] sm:$0xff]
        %v446 = vld [vmem:[#allocation2 + $0x28] sm:$0xff]
        %v447 = vld [vmem:[#allocation2 + $0x30] sm:$0xff]
        %v448 = vld [vmem:[#allocation2 + $0x38] sm:$0xff]
        %v449 = vld [vmem:[#allocation2 + $0x40] sm:$0xff]
        %v450 = vld [vmem:[#allocation2 + $0x48] sm:$0xff]
        %v451 = vld [vmem:[#allocation2 + $0x50] sm:$0xff]
        %v452 = vld [vmem:[#allocation2 + $0x58] sm:$0xff]
        %v453 = vld [vmem:[#allocation2 + $0x60] sm:$0xff]
        %v454 = vld [vmem:[#allocation2 + $0x68] sm:$0xff]
        %v455 = vld [vmem:[#allocation2 + $0x70] sm:$0xff]
        %v456 = vld [vmem:[#allocation2 + $0x78] sm:$0xff]
        %v457 = vld [vmem:[#allocation2 + $0x80] sm:$0xff]
        %v458 = vld [vmem:[#allocation2 + $0x88] sm:$0xff]
        %v459 = vld [vmem:[#allocation2 + $0x90] sm:$0xff]
        %v460 = vld [vmem:[#allocation2 + $0x98] sm:$0xff]
        %v461 = vpack.c.bf16 %v442, %v441
        %v462 = vpack.c.bf16 %v444, %v443
        %v463 = vpack.c.bf16 %v446, %v445
        %v464 = vpack.c.bf16 %v448, %v447
        %v465 = vpack.c.bf16 %v450, %v449
        %v466 = vpack.c.bf16 %v452, %v451
        %v467 = vpack.c.bf16 %v454, %v453
        %v468 = vpack.c.bf16 %v456, %v455
        %v469 = vpack.c.bf16 %v458, %v457
        %v470 = vpack.c.bf16 %v460, %v459
        %v471 = vld [vmem:[%s1] sm:$0xf]
        %v472 = vld [vmem:[%s1 + $0x4] sm:$0xf]
        %v475 = vunpack.c.l.b16 %v471
        %v476 = vunpack.c.l.b16 %v472
        %v477 = vpack.c.b16 %v476, %v475
        %vm479 = vcmask 130048
        %v481 = vsel %vm479, %v461, 0
        %v484 = vsel %vm479, %v462, 0
        %v487 = vsel %vm479, %v463, 0
        %v490 = vsel %vm479, %v464, 0
        %v493 = vsel %vm479, %v465, 0
        %v496 = vsel %vm479, %v466, 0
        %v499 = vsel %vm479, %v467, 0
        %v502 = vsel %vm479, %v468, 0
        %v505 = vsel %vm479, %v469, 0
        %v508 = vsel %vm479, %v470, 0
        %510 = vmatprep.subr.bf16.mxu0 0
        %511 = vmatpush1.bf16.msra.mxu0 %v477
        %512 = vmatprep.subr.bf16.mxu0 0
        %513 = vmatpush1.bf16.msra.mxu0 0
        %514 = vmatprep.subr.bf16.mxu0 0
        %515 = vmatpush1.bf16.msra.mxu0 0
        %516 = vmatprep.subr.bf16.mxu0 0
        %517 = vmatpush1.bf16.msra.mxu0 0
        %518 = vmatprep.subr.bf16.mxu0 0
        %519 = vmatpush1.bf16.msra.mxu0 0
        %520 = vmatprep.subr.bf16.mxu0 0
        %521 = vmatpush1.bf16.msra.mxu0 0
        %522 = vmatprep.subr.bf16.mxu0 0
        %523 = vmatpush1.bf16.msra.mxu0 0
        %524 = vmatprep.subr.bf16.mxu0 0
        %525 = vmatpush1.bf16.msra.mxu0 0
        %526 = vmatprep.subr.bf16.mxu0 0
        %527 = vmatpush1.bf16.msra.mxu0 0
        %528 = vmatprep.subr.bf16.mxu0 0
        %529 = vmatpush1.bf16.msra.mxu0 0
        %530 = vmatprep.subr.bf16.mxu0 0
        %531 = vmatpush1.bf16.msra.mxu0 0
        %532 = vmatprep.subr.bf16.mxu0 0
        %533 = vmatpush1.bf16.msra.mxu0 0
        %534 = vmatprep.subr.bf16.mxu0 0
        %535 = vmatpush1.bf16.msra.mxu0 0
        %536 = vmatprep.subr.bf16.mxu0 0
        %537 = vmatpush1.bf16.msra.mxu0 0
        %538 = vmatprep.subr.bf16.mxu0 0
        %539 = vmatpush1.bf16.msra.mxu0 0
        %540 = vmatprep.subr.bf16.mxu0 0
        %541 = vmatpush1.bf16.msra.mxu0 0
        %542 = vmatprep.mubr.bf16.mxu0 0
        %543 = vmatmul.mubr.bf16.gmra.mrb[0].mxu0 %v481
        %v544 = vpop.f32.mrb[0].mxu0
        %v545 = vadd.f32 0.0, %v544
        %v546 = vpop.f32.mrb[0].mxu0
        %v547 = vpop.f32.mrb[0].mxu0
        %v548 = vadd.f32 0.0, %v547
        %v549 = vpop.f32.mrb[0].mxu0
        %550 = vmatprep.mubr.bf16.mxu0 0
        %551 = vmatmul.mubr.bf16.gmra.mrb[0].mxu0 %v484
        %v552 = vpop.f32.mrb[0].mxu0
        %v553 = vadd.f32 0.0, %v552
        %v554 = vpop.f32.mrb[0].mxu0
        %v555 = vpop.f32.mrb[0].mxu0
        %v556 = vadd.f32 0.0, %v555
        %v557 = vpop.f32.mrb[0].mxu0
        %558 = vmatprep.mubr.bf16.mxu0 0
        %559 = vmatmul.mubr.bf16.gmra.mrb[0].mxu0 %v487
        %v560 = vpop.f32.mrb[0].mxu0
        %v561 = vadd.f32 0.0, %v560
        %v562 = vpop.f32.mrb[0].mxu0
        %v563 = vpop.f32.mrb[0].mxu0
        %v564 = vadd.f32 0.0, %v563
        %v565 = vpop.f32.mrb[0].mxu0
        %566 = vmatprep.mubr.bf16.mxu0 0
        %567 = vmatmul.mubr.bf16.gmra.mrb[0].mxu0 %v490
        %v568 = vpop.f32.mrb[0].mxu0
        %v569 = vadd.f32 0.0, %v568
        %v570 = vpop.f32.mrb[0].mxu0
        %v571 = vpop.f32.mrb[0].mxu0
        %v572 = vadd.f32 0.0, %v571
        %v573 = vpop.f32.mrb[0].mxu0
        %574 = vmatprep.mubr.bf16.mxu0 0
        %575 = vmatmul.mubr.bf16.gmra.mrb[0].mxu0 %v493
        %v576 = vpop.f32.mrb[0].mxu0
        %v577 = vadd.f32 0.0, %v576
        %v578 = vpop.f32.mrb[0].mxu0
        %v579 = vpop.f32.mrb[0].mxu0
        %v580 = vadd.f32 0.0, %v579
        %v581 = vpop.f32.mrb[0].mxu0
        %582 = vmatprep.mubr.bf16.mxu0 0
        %583 = vmatmul.mubr.bf16.gmra.mrb[0].mxu0 %v496
        %v584 = vpop.f32.mrb[0].mxu0
        %v585 = vadd.f32 0.0, %v584
        %v586 = vpop.f32.mrb[0].mxu0
        %v587 = vpop.f32.mrb[0].mxu0
        %v588 = vadd.f32 0.0, %v587
        %v589 = vpop.f32.mrb[0].mxu0
        %590 = vmatprep.mubr.bf16.mxu0 0
        %591 = vmatmul.mubr.bf16.gmra.mrb[0].mxu0 %v499
        %v592 = vpop.f32.mrb[0].mxu0
        %v593 = vadd.f32 0.0, %v592
        %v594 = vpop.f32.mrb[0].mxu0
        %v595 = vpop.f32.mrb[0].mxu0
        %v596 = vadd.f32 0.0, %v595
        %v597 = vpop.f32.mrb[0].mxu0
        %598 = vmatprep.mubr.bf16.mxu0 0
        %599 = vmatmul.mubr.bf16.gmra.mrb[0].mxu0 %v502
        %v600 = vpop.f32.mrb[0].mxu0
        %v601 = vadd.f32 0.0, %v600
        %v602 = vpop.f32.mrb[0].mxu0
        %v603 = vpop.f32.mrb[0].mxu0
        %v604 = vadd.f32 0.0, %v603
        %v605 = vpop.f32.mrb[0].mxu0
        %606 = vmatprep.mubr.bf16.mxu0 0
        %607 = vmatmul.mubr.bf16.gmra.mrb[0].mxu0 %v505
        %v608 = vpop.f32.mrb[0].mxu0
        %v609 = vadd.f32 0.0, %v608
        %v610 = vpop.f32.mrb[0].mxu0
        %v611 = vpop.f32.mrb[0].mxu0
        %v612 = vadd.f32 0.0, %v611
        %v613 = vpop.f32.mrb[0].mxu0
        %614 = vmatprep.mubr.bf16.mxu0 0
        %615 = vmatmul.mubr.bf16.gmra.mrb[0].mxu0 %v508
        %v616 = vpop.f32.mrb[0].mxu0
        %v617 = vadd.f32 0.0, %v616
        %v618 = vpop.f32.mrb[0].mxu0
        %v619 = vpop.f32.mrb[0].mxu0
        %v620 = vadd.f32 0.0, %v619
        %v621 = vpop.f32.mrb[0].mxu0
        %622 = vdwg.mxu0
        %v623 = vld [vmem:[%s4] sm:$0x1]
        %v625 = vlaneseq
        %v626 = vshrl.u32 %v625, 7
        %v627 = vsub.s32 0, %v626
        %v628 = vrot.slane %v623, %v627
        %v630 = vmul.f32 %v545, %v628
        %v631 = vmul.f32 %v548, %v628
        %v632 = vmul.f32 %v553, %v628
        %v633 = vmul.f32 %v556, %v628
        %v634 = vmul.f32 %v561, %v628
        %v635 = vmul.f32 %v564, %v628
        %v636 = vmul.f32 %v569, %v628
        %v637 = vmul.f32 %v572, %v628
        %v638 = vmul.f32 %v577, %v628
        %v639 = vmul.f32 %v580, %v628
        %v640 = vmul.f32 %v585, %v628
        %v641 = vmul.f32 %v588, %v628
        %v642 = vmul.f32 %v593, %v628
        %v643 = vmul.f32 %v596, %v628
        %v644 = vmul.f32 %v601, %v628
        %v645 = vmul.f32 %v604, %v628
        %v646 = vmul.f32 %v609, %v628
        %v647 = vmul.f32 %v612, %v628
        %v648 = vmul.f32 %v617, %v628
        %v649 = vmul.f32 %v620, %v628
        %v650 = vld [vmem:[%s5] sm:$0x1]
        %v652 = vlaneseq
        %v653 = vshrl.u32 %v652, 7
        %v654 = vsub.s32 0, %v653
        %v655 = vrot.slane %v650, %v654
        %v657 = vadd.f32 %v630, %v655
        %v658 = vadd.f32 %v631, %v655
        %v659 = vadd.f32 %v632, %v655
        %v660 = vadd.f32 %v633, %v655
        %v661 = vadd.f32 %v634, %v655
        %v662 = vadd.f32 %v635, %v655
        %v663 = vadd.f32 %v636, %v655
        %v664 = vadd.f32 %v637, %v655
        %v665 = vadd.f32 %v638, %v655
        %v666 = vadd.f32 %v639, %v655
        %v667 = vadd.f32 %v640, %v655
        %v668 = vadd.f32 %v641, %v655
        %v669 = vadd.f32 %v642, %v655
        %v670 = vadd.f32 %v643, %v655
        %v671 = vadd.f32 %v644, %v655
        %v672 = vadd.f32 %v645, %v655
        %v673 = vadd.f32 %v646, %v655
        %v674 = vadd.f32 %v647, %v655
        %v675 = vadd.f32 %v648, %v655
        %v676 = vadd.f32 %v649, %v655
        %v677 = vmax.f32 %v657, 0.0
        %v678 = vmax.f32 %v658, 0.0
        %v679 = vmax.f32 %v659, 0.0
        %v680 = vmax.f32 %v660, 0.0
        %v681 = vmax.f32 %v661, 0.0
        %v682 = vmax.f32 %v662, 0.0
        %v683 = vmax.f32 %v663, 0.0
        %v684 = vmax.f32 %v664, 0.0
        %v685 = vmax.f32 %v665, 0.0
        %v686 = vmax.f32 %v666, 0.0
        %v687 = vmax.f32 %v667, 0.0
        %v688 = vmax.f32 %v668, 0.0
        %v689 = vmax.f32 %v669, 0.0
        %v690 = vmax.f32 %v670, 0.0
        %v691 = vmax.f32 %v671, 0.0
        %v692 = vmax.f32 %v672, 0.0
        %v693 = vmax.f32 %v673, 0.0
        %v694 = vmax.f32 %v674, 0.0
        %v695 = vmax.f32 %v675, 0.0
        %v696 = vmax.f32 %v676, 0.0
        %v697 = vpack.c.bf16 %v678, %v677
        %v698 = vpack.c.bf16 %v680, %v679
        %v699 = vpack.c.bf16 %v682, %v681
        %v700 = vpack.c.bf16 %v684, %v683
        %v701 = vpack.c.bf16 %v686, %v685
        %v702 = vpack.c.bf16 %v688, %v687
        %v703 = vpack.c.bf16 %v690, %v689
        %v704 = vpack.c.bf16 %v692, %v691
        %v705 = vpack.c.bf16 %v694, %v693
        %v706 = vpack.c.bf16 %v696, %v695
        %v717 = vunpack.c.l.b16 %v697
        %v718 = vunpack.c.h.b16 %v697
        %v719 = vunpack.c.l.b16 %v698
        %v720 = vunpack.c.h.b16 %v698
        %v721 = vunpack.c.l.b16 %v699
        %v722 = vunpack.c.h.b16 %v699
        %v723 = vunpack.c.l.b16 %v700
        %v724 = vunpack.c.h.b16 %v700
        %v725 = vunpack.c.l.b16 %v701
        %v726 = vunpack.c.h.b16 %v701
        %v727 = vunpack.c.l.b16 %v702
        %v728 = vunpack.c.h.b16 %v702
        %v729 = vunpack.c.l.b16 %v703
        %v730 = vunpack.c.h.b16 %v703
        %v731 = vunpack.c.l.b16 %v704
        %v732 = vunpack.c.h.b16 %v704
        %v733 = vunpack.c.l.b16 %v705
        %v734 = vunpack.c.h.b16 %v705
        %v735 = vunpack.c.l.b16 %v706
        %v736 = vunpack.c.h.b16 %v706
        %v737 = vpack.c.b16 %v717, %v717
        %v738 = vpack.c.b16 %v718, %v718
        %v739 = vpack.c.b16 %v719, %v719
        %v740 = vpack.c.b16 %v720, %v720
        %v741 = vpack.c.b16 %v721, %v721
        %v742 = vpack.c.b16 %v722, %v722
        %v743 = vpack.c.b16 %v723, %v723
        %v744 = vpack.c.b16 %v724, %v724
        %v745 = vpack.c.b16 %v725, %v725
        %v746 = vpack.c.b16 %v726, %v726
        %v747 = vpack.c.b16 %v727, %v727
        %v748 = vpack.c.b16 %v728, %v728
        %v749 = vpack.c.b16 %v729, %v729
        %v750 = vpack.c.b16 %v730, %v730
        %v751 = vpack.c.b16 %v731, %v731
        %v752 = vpack.c.b16 %v732, %v732
        %v753 = vpack.c.b16 %v733, %v733
        %v754 = vpack.c.b16 %v734, %v734
        %v755 = vpack.c.b16 %v735, %v735
        %v756 = vpack.c.b16 %v736, %v736
        %vm757 = vsmask.f32 256
        %vm758 = vsmask.f32 4368
        %vm759 = vmor %vm757, %vm758
        %v761 = vshrl.u32 %v737, 16
        %v763 = vrot.slane %v761, 7
        %v764 = vshll.u32 %v737, 16
        %v766 = vor.u32 %v763, %v764
        %v767 = vrot.slane %v763, 4
        %v769 = vshrl.u32 %v738, 16
        %v771 = vrot.slane %v769, 7
        %v772 = vshll.u32 %v738, 16
        %v774 = vor.u32 %v771, %v772
        %v775 = vsel %vm759, %v767, %v774
        %v776 = vrot.slane %v771, 4
        %v778 = vshrl.u32 %v739, 16
        %v780 = vrot.slane %v778, 7
        %v781 = vshll.u32 %v739, 16
        %v783 = vor.u32 %v780, %v781
        %v784 = vrot.slane %v780, 4
        %v786 = vshrl.u32 %v740, 16
        %v788 = vrot.slane %v786, 7
        %v789 = vshll.u32 %v740, 16
        %v791 = vor.u32 %v788, %v789
        %v792 = vsel %vm759, %v784, %v791
        %v793 = vrot.slane %v788, 4
        %v795 = vshrl.u32 %v741, 16
        %v797 = vrot.slane %v795, 7
        %v798 = vshll.u32 %v741, 16
        %v800 = vor.u32 %v797, %v798
        %v801 = vrot.slane %v797, 4
        %v803 = vshrl.u32 %v742, 16
        %v805 = vrot.slane %v803, 7
        %v806 = vshll.u32 %v742, 16
        %v808 = vor.u32 %v805, %v806
        %v809 = vsel %vm759, %v801, %v808
        %v810 = vrot.slane %v805, 4
        %v812 = vshrl.u32 %v743, 16
        %v814 = vrot.slane %v812, 7
        %v815 = vshll.u32 %v743, 16
        %v817 = vor.u32 %v814, %v815
        %v818 = vrot.slane %v814, 4
        %v820 = vshrl.u32 %v744, 16
        %v822 = vrot.slane %v820, 7
        %v823 = vshll.u32 %v744, 16
        %v825 = vor.u32 %v822, %v823
        %v826 = vsel %vm759, %v818, %v825
        %v827 = vrot.slane %v822, 4
        %v829 = vshrl.u32 %v745, 16
        %v831 = vrot.slane %v829, 7
        %v832 = vshll.u32 %v745, 16
        %v834 = vor.u32 %v831, %v832
        %v835 = vrot.slane %v831, 4
        %v837 = vshrl.u32 %v746, 16
        %v839 = vrot.slane %v837, 7
        %v840 = vshll.u32 %v746, 16
        %v842 = vor.u32 %v839, %v840
        %v843 = vsel %vm759, %v835, %v842
        %v844 = vrot.slane %v839, 4
        %v846 = vshrl.u32 %v747, 16
        %v848 = vrot.slane %v846, 7
        %v849 = vshll.u32 %v747, 16
        %v851 = vor.u32 %v848, %v849
        %v852 = vrot.slane %v848, 4
        %v854 = vshrl.u32 %v748, 16
        %v856 = vrot.slane %v854, 7
        %v857 = vshll.u32 %v748, 16
        %v859 = vor.u32 %v856, %v857
        %v860 = vsel %vm759, %v852, %v859
        %v861 = vrot.slane %v856, 4
        %v863 = vshrl.u32 %v749, 16
        %v865 = vrot.slane %v863, 7
        %v866 = vshll.u32 %v749, 16
        %v868 = vor.u32 %v865, %v866
        %v869 = vrot.slane %v865, 4
        %v871 = vshrl.u32 %v750, 16
        %v873 = vrot.slane %v871, 7
        %v874 = vshll.u32 %v750, 16
        %v876 = vor.u32 %v873, %v874
        %v877 = vsel %vm759, %v869, %v876
        %v878 = vrot.slane %v873, 4
        %v880 = vshrl.u32 %v751, 16
        %v882 = vrot.slane %v880, 7
        %v883 = vshll.u32 %v751, 16
        %v885 = vor.u32 %v882, %v883
        %v886 = vrot.slane %v882, 4
        %v888 = vshrl.u32 %v752, 16
        %v890 = vrot.slane %v888, 7
        %v891 = vshll.u32 %v752, 16
        %v893 = vor.u32 %v890, %v891
        %v894 = vsel %vm759, %v886, %v893
        %v895 = vrot.slane %v890, 4
        %v897 = vshrl.u32 %v753, 16
        %v899 = vrot.slane %v897, 7
        %v900 = vshll.u32 %v753, 16
        %v902 = vor.u32 %v899, %v900
        %v903 = vrot.slane %v899, 4
        %v905 = vshrl.u32 %v754, 16
        %v907 = vrot.slane %v905, 7
        %v908 = vshll.u32 %v754, 16
        %v910 = vor.u32 %v907, %v908
        %v911 = vsel %vm759, %v903, %v910
        %v912 = vrot.slane %v907, 4
        %v914 = vshrl.u32 %v755, 16
        %v916 = vrot.slane %v914, 7
        %v917 = vshll.u32 %v755, 16
        %v919 = vor.u32 %v916, %v917
        %v920 = vrot.slane %v916, 4
        %v922 = vshrl.u32 %v756, 16
        %v924 = vrot.slane %v922, 7
        %v925 = vshll.u32 %v756, 16
        %v927 = vor.u32 %v924, %v925
        %v928 = vsel %vm759, %v920, %v927
        %v929 = vrot.slane %v924, 4
        %vm960 = vcmask 27648
        %vm961 = vsmask.f32 7938
        %vm962 = vmand %vm960, %vm961
        %v963 = vld [vmem:[#allocation3] sm:$0xf]
        %v964 = vsel %vm962, %v766, %v963
        %965 = vst [vmem:[#allocation3] sm:$0xf] %v964
        %966 = vst.msk [vmem:[#allocation3 + $0x4] sm:$0xf] %vm389, %v775
        %vm967 = vcmask 24576
        %vm968 = vmand %vm967, %vm757
        %v969 = vld [vmem:[#allocation3 + $0x8] sm:$0x1]
        %v970 = vsel %vm968, %v776, %v969
        %971 = vst [vmem:[#allocation3 + $0x8] sm:$0x1] %v970
        %v972 = vld [vmem:[#allocation3 + $0xc] sm:$0xf]
        %v973 = vsel %vm962, %v783, %v972
        %974 = vst [vmem:[#allocation3 + $0xc] sm:$0xf] %v973
        %975 = vst.msk [vmem:[#allocation3 + $0x10] sm:$0xf] %vm389, %v792
        %v976 = vld [vmem:[#allocation3 + $0x14] sm:$0x1]
        %v977 = vsel %vm968, %v793, %v976
        %978 = vst [vmem:[#allocation3 + $0x14] sm:$0x1] %v977
        %v979 = vld [vmem:[#allocation3 + $0x18] sm:$0xf]
        %v980 = vsel %vm962, %v800, %v979
        %981 = vst [vmem:[#allocation3 + $0x18] sm:$0xf] %v980
        %982 = vst.msk [vmem:[#allocation3 + $0x1c] sm:$0xf] %vm389, %v809
        %v983 = vld [vmem:[#allocation3 + $0x20] sm:$0x1]
        %v984 = vsel %vm968, %v810, %v983
        %985 = vst [vmem:[#allocation3 + $0x20] sm:$0x1] %v984
        %v986 = vld [vmem:[#allocation3 + $0x24] sm:$0xf]
        %v987 = vsel %vm962, %v817, %v986
        %988 = vst [vmem:[#allocation3 + $0x24] sm:$0xf] %v987
        %989 = vst.msk [vmem:[#allocation3 + $0x28] sm:$0xf] %vm389, %v826
        %v990 = vld [vmem:[#allocation3 + $0x2c] sm:$0x1]
        %v991 = vsel %vm968, %v827, %v990
        %992 = vst [vmem:[#allocation3 + $0x2c] sm:$0x1] %v991
        %v993 = vld [vmem:[#allocation3 + $0x30] sm:$0xf]
        %v994 = vsel %vm962, %v834, %v993
        %995 = vst [vmem:[#allocation3 + $0x30] sm:$0xf] %v994
        %996 = vst.msk [vmem:[#allocation3 + $0x34] sm:$0xf] %vm389, %v843
        %v997 = vld [vmem:[#allocation3 + $0x38] sm:$0x1]
        %v998 = vsel %vm968, %v844, %v997
        %999 = vst [vmem:[#allocation3 + $0x38] sm:$0x1] %v998
        %v1000 = vld [vmem:[#allocation3 + $0x3c] sm:$0xf]
        %v1001 = vsel %vm962, %v851, %v1000
        %1002 = vst [vmem:[#allocation3 + $0x3c] sm:$0xf] %v1001
        %1003 = vst.msk [vmem:[#allocation3 + $0x40] sm:$0xf] %vm389, %v860
        %v1004 = vld [vmem:[#allocation3 + $0x44] sm:$0x1]
        %v1005 = vsel %vm968, %v861, %v1004
        %1006 = vst [vmem:[#allocation3 + $0x44] sm:$0x1] %v1005
        %v1007 = vld [vmem:[#allocation3 + $0x48] sm:$0xf]
        %v1008 = vsel %vm962, %v868, %v1007
        %1009 = vst [vmem:[#allocation3 + $0x48] sm:$0xf] %v1008
        %1010 = vst.msk [vmem:[#allocation3 + $0x4c] sm:$0xf] %vm389, %v877
        %v1011 = vld [vmem:[#allocation3 + $0x50] sm:$0x1]
        %v1012 = vsel %vm968, %v878, %v1011
        %1013 = vst [vmem:[#allocation3 + $0x50] sm:$0x1] %v1012
        %v1014 = vld [vmem:[#allocation3 + $0x54] sm:$0xf]
        %v1015 = vsel %vm962, %v885, %v1014
        %1016 = vst [vmem:[#allocation3 + $0x54] sm:$0xf] %v1015
        %1017 = vst.msk [vmem:[#allocation3 + $0x58] sm:$0xf] %vm389, %v894
        %v1018 = vld [vmem:[#allocation3 + $0x5c] sm:$0x1]
        %v1019 = vsel %vm968, %v895, %v1018
        %1020 = vst [vmem:[#allocation3 + $0x5c] sm:$0x1] %v1019
        %v1021 = vld [vmem:[#allocation3 + $0x60] sm:$0xf]
        %v1022 = vsel %vm962, %v902, %v1021
        %1023 = vst [vmem:[#allocation3 + $0x60] sm:$0xf] %v1022
        %1024 = vst.msk [vmem:[#allocation3 + $0x64] sm:$0xf] %vm389, %v911
        %v1025 = vld [vmem:[#allocation3 + $0x68] sm:$0x1]
        %v1026 = vsel %vm968, %v912, %v1025
        %1027 = vst [vmem:[#allocation3 + $0x68] sm:$0x1] %v1026
        %v1028 = vld [vmem:[#allocation3 + $0x6c] sm:$0xf]
        %v1029 = vsel %vm962, %v919, %v1028
        %1030 = vst [vmem:[#allocation3 + $0x6c] sm:$0xf] %v1029
        %1031 = vst.msk [vmem:[#allocation3 + $0x70] sm:$0xf] %vm389, %v928
        %v1032 = vld [vmem:[#allocation3 + $0x74] sm:$0x1]
        %v1033 = vsel %vm968, %v929, %v1032
        %1034 = vst [vmem:[#allocation3 + $0x74] sm:$0x1] %v1033
        %p1035 = scmp.eq.s32.totalorder %s29, 0
        // Predicated region
        $region85: #{tpu_custom_call.1} parent=55 // pred_check
          %p1036 = pneg %p1035
        $region86: #{tpu_custom_call.1} parent=55 // pred_check_branch
          %1038 = sbr.rel (%p1036) target = $region88
        $region87: #{tpu_custom_call.1} parent=55 // pred_region
          %1039 = vst.msk [vmem:[#allocation3] sm:$0xf] %vm389, 0
          %1040 = vst.msk [vmem:[#allocation3 + $0x4] sm:$0xf] %vm389, 0
          %1041 = vst.msk [vmem:[#allocation3 + $0x8] sm:$0x1] %vm392, 0
        $region88: #{tpu_custom_call.1} parent=55 // pred_fallthru
          _
        %p1042 = scmp.eq.s32.totalorder %s29, 1
        // Predicated region
        $region89: #{tpu_custom_call.1} parent=55 // pred_check
          %p1043 = pneg %p1042
        $region90: #{tpu_custom_call.1} parent=55 // pred_check_branch
          %1045 = sbr.rel (%p1043) target = $region92
        $region91: #{tpu_custom_call.1} parent=55 // pred_region
          %s1046 = scalar_lea.vmem [#allocation3], 108
          %1047 = vst.msk [vmem:[%s1046] sm:$0xf] %vm389, 0
          %1048 = vst.msk [vmem:[%s1046 + $0x4] sm:$0xf] %vm389, 0
          %1049 = vst.msk [vmem:[%s1046 + $0x8] sm:$0x1] %vm392, 0
        $region92: #{tpu_custom_call.1} parent=55 // pred_fallthru
          _
        %v1050 = vld [vmem:[#allocation3] sm:$0xf]
        %v1051 = vld [vmem:[#allocation3 + $0x4] sm:$0xf]
        %v1052 = vld [vmem:[#allocation3 + $0x8] sm:$0x1]
        %v1053 = vld [vmem:[#allocation3 + $0xc] sm:$0xf]
        %v1054 = vld [vmem:[#allocation3 + $0x10] sm:$0xf]
        %v1055 = vld [vmem:[#allocation3 + $0x14] sm:$0x1]
        %v1056 = vld [vmem:[#allocation3 + $0x18] sm:$0xf]
        %v1057 = vld [vmem:[#allocation3 + $0x1c] sm:$0xf]
        %v1058 = vld [vmem:[#allocation3 + $0x20] sm:$0x1]
        %v1059 = vld [vmem:[#allocation3 + $0x24] sm:$0xf]
        %v1060 = vld [vmem:[#allocation3 + $0x28] sm:$0xf]
        %v1061 = vld [vmem:[#allocation3 + $0x2c] sm:$0x1]
        %v1062 = vld [vmem:[#allocation3 + $0x30] sm:$0xf]
        %v1063 = vld [vmem:[#allocation3 + $0x34] sm:$0xf]
        %v1064 = vld [vmem:[#allocation3 + $0x38] sm:$0x1]
        %v1065 = vld [vmem:[#allocation3 + $0x3c] sm:$0xf]
        %v1066 = vld [vmem:[#allocation3 + $0x40] sm:$0xf]
        %v1067 = vld [vmem:[#allocation3 + $0x44] sm:$0x1]
        %v1068 = vld [vmem:[#allocation3 + $0x48] sm:$0xf]
        %v1069 = vld [vmem:[#allocation3 + $0x4c] sm:$0xf]
        %v1070 = vld [vmem:[#allocation3 + $0x50] sm:$0x1]
        %v1071 = vld [vmem:[#allocation3 + $0x54] sm:$0xf]
        %v1072 = vld [vmem:[#allocation3 + $0x58] sm:$0xf]
        %v1073 = vld [vmem:[#allocation3 + $0x5c] sm:$0x1]
        %v1074 = vld [vmem:[#allocation3 + $0x60] sm:$0xf]
        %v1075 = vld [vmem:[#allocation3 + $0x64] sm:$0xf]
        %v1076 = vld [vmem:[#allocation3 + $0x68] sm:$0x1]
        %v1077 = vld [vmem:[#allocation3 + $0x6c] sm:$0xf]
        %v1078 = vld [vmem:[#allocation3 + $0x70] sm:$0xf]
        %v1079 = vld [vmem:[#allocation3 + $0x74] sm:$0x1]
        %vm1080 = vsmask.f32 3328
        %vm1081 = vsmask.f32 7440
        %vm1082 = vmor %vm1080, %vm1081
        %v1084 = vshrl.u32 %v1050, 16
        %v1086 = vrot.slane %v1084, 4
        %v1087 = vshll.u32 %v1050, 16
        %v1089 = vrot.slane %v1087, 5
        %v1090 = vor.u32 %v1086, %v1089
        %v1091 = vrot.slane %v1090, 4
        %v1093 = vshll.u32 %v1051, 16
        %v1095 = vrot.slane %v1093, 5
        %v1096 = vsel %vm1082, %v1091, %v1095
        %v1097 = vshrl.u32 %v1051, 16
        %v1099 = vrot.slane %v1097, 4
        %v1100 = vor.u32 %v1099, %v1095
        %v1101 = vrot.slane %v1100, 4
        %v1103 = vshll.u32 %v1052, 16
        %v1105 = vrot.slane %v1103, 5
        %v1106 = vsel %vm1082, %v1101, %v1105
        %v1108 = vshrl.u32 %v1053, 16
        %v1110 = vrot.slane %v1108, 4
        %v1111 = vshll.u32 %v1053, 16
        %v1113 = vrot.slane %v1111, 5
        %v1114 = vor.u32 %v1110, %v1113
        %v1115 = vrot.slane %v1114, 4
        %v1117 = vshll.u32 %v1054, 16
        %v1119 = vrot.slane %v1117, 5
        %v1120 = vsel %vm1082, %v1115, %v1119
        %v1121 = vshrl.u32 %v1054, 16
        %v1123 = vrot.slane %v1121, 4
        %v1124 = vor.u32 %v1123, %v1119
        %v1125 = vrot.slane %v1124, 4
        %v1127 = vshll.u32 %v1055, 16
        %v1129 = vrot.slane %v1127, 5
        %v1130 = vsel %vm1082, %v1125, %v1129
        %v1132 = vshrl.u32 %v1056, 16
        %v1134 = vrot.slane %v1132, 4
        %v1135 = vshll.u32 %v1056, 16
        %v1137 = vrot.slane %v1135, 5
        %v1138 = vor.u32 %v1134, %v1137
        %v1139 = vrot.slane %v1138, 4
        %v1141 = vshll.u32 %v1057, 16
        %v1143 = vrot.slane %v1141, 5
        %v1144 = vsel %vm1082, %v1139, %v1143
        %v1145 = vshrl.u32 %v1057, 16
        %v1147 = vrot.slane %v1145, 4
        %v1148 = vor.u32 %v1147, %v1143
        %v1149 = vrot.slane %v1148, 4
        %v1151 = vshll.u32 %v1058, 16
        %v1153 = vrot.slane %v1151, 5
        %v1154 = vsel %vm1082, %v1149, %v1153
        %v1156 = vshrl.u32 %v1059, 16
        %v1158 = vrot.slane %v1156, 4
        %v1159 = vshll.u32 %v1059, 16
        %v1161 = vrot.slane %v1159, 5
        %v1162 = vor.u32 %v1158, %v1161
        %v1163 = vrot.slane %v1162, 4
        %v1165 = vshll.u32 %v1060, 16
        %v1167 = vrot.slane %v1165, 5
        %v1168 = vsel %vm1082, %v1163, %v1167
        %v1169 = vshrl.u32 %v1060, 16
        %v1171 = vrot.slane %v1169, 4
        %v1172 = vor.u32 %v1171, %v1167
        %v1173 = vrot.slane %v1172, 4
        %v1175 = vshll.u32 %v1061, 16
        %v1177 = vrot.slane %v1175, 5
        %v1178 = vsel %vm1082, %v1173, %v1177
        %v1180 = vshrl.u32 %v1062, 16
        %v1182 = vrot.slane %v1180, 4
        %v1183 = vshll.u32 %v1062, 16
        %v1185 = vrot.slane %v1183, 5
        %v1186 = vor.u32 %v1182, %v1185
        %v1187 = vrot.slane %v1186, 4
        %v1189 = vshll.u32 %v1063, 16
        %v1191 = vrot.slane %v1189, 5
        %v1192 = vsel %vm1082, %v1187, %v1191
        %v1193 = vshrl.u32 %v1063, 16
        %v1195 = vrot.slane %v1193, 4
        %v1196 = vor.u32 %v1195, %v1191
        %v1197 = vrot.slane %v1196, 4
        %v1199 = vshll.u32 %v1064, 16
        %v1201 = vrot.slane %v1199, 5
        %v1202 = vsel %vm1082, %v1197, %v1201
        %v1204 = vshrl.u32 %v1065, 16
        %v1206 = vrot.slane %v1204, 4
        %v1207 = vshll.u32 %v1065, 16
        %v1209 = vrot.slane %v1207, 5
        %v1210 = vor.u32 %v1206, %v1209
        %v1211 = vrot.slane %v1210, 4
        %v1213 = vshll.u32 %v1066, 16
        %v1215 = vrot.slane %v1213, 5
        %v1216 = vsel %vm1082, %v1211, %v1215
        %v1217 = vshrl.u32 %v1066, 16
        %v1219 = vrot.slane %v1217, 4
        %v1220 = vor.u32 %v1219, %v1215
        %v1221 = vrot.slane %v1220, 4
        %v1223 = vshll.u32 %v1067, 16
        %v1225 = vrot.slane %v1223, 5
        %v1226 = vsel %vm1082, %v1221, %v1225
        %v1228 = vshrl.u32 %v1068, 16
        %v1230 = vrot.slane %v1228, 4
        %v1231 = vshll.u32 %v1068, 16
        %v1233 = vrot.slane %v1231, 5
        %v1234 = vor.u32 %v1230, %v1233
        %v1235 = vrot.slane %v1234, 4
        %v1237 = vshll.u32 %v1069, 16
        %v1239 = vrot.slane %v1237, 5
        %v1240 = vsel %vm1082, %v1235, %v1239
        %v1241 = vshrl.u32 %v1069, 16
        %v1243 = vrot.slane %v1241, 4
        %v1244 = vor.u32 %v1243, %v1239
        %v1245 = vrot.slane %v1244, 4
        %v1247 = vshll.u32 %v1070, 16
        %v1249 = vrot.slane %v1247, 5
        %v1250 = vsel %vm1082, %v1245, %v1249
        %v1252 = vshrl.u32 %v1071, 16
        %v1254 = vrot.slane %v1252, 4
        %v1255 = vshll.u32 %v1071, 16
        %v1257 = vrot.slane %v1255, 5
        %v1258 = vor.u32 %v1254, %v1257
        %v1259 = vrot.slane %v1258, 4
        %v1261 = vshll.u32 %v1072, 16
        %v1263 = vrot.slane %v1261, 5
        %v1264 = vsel %vm1082, %v1259, %v1263
        %v1265 = vshrl.u32 %v1072, 16
        %v1267 = vrot.slane %v1265, 4
        %v1268 = vor.u32 %v1267, %v1263
        %v1269 = vrot.slane %v1268, 4
        %v1271 = vshll.u32 %v1073, 16
        %v1273 = vrot.slane %v1271, 5
        %v1274 = vsel %vm1082, %v1269, %v1273
        %vm1299 = vcmask 1042432
        %vm1300 = vcmask 1046532
        %vm1301 = vmor %vm1299, %vm1300
        %v1302 = vrot.slane %v1050, 5
        %v1303 = vrot.slane %v1302, 4
        %v1304 = vrot.slane %v1051, 5
        %v1305 = vsel %vm1301, %v1303, %v1304
        %v1306 = vrot.slane %v1304, 4
        %v1307 = vrot.slane %v1052, 5
        %v1308 = vsel %vm1301, %v1306, %v1307
        %v1309 = vrot.slane %v1053, 5
        %v1310 = vrot.slane %v1309, 4
        %v1311 = vrot.slane %v1054, 5
        %v1312 = vsel %vm1301, %v1310, %v1311
        %v1313 = vrot.slane %v1311, 4
        %v1314 = vrot.slane %v1055, 5
        %v1315 = vsel %vm1301, %v1313, %v1314
        %v1316 = vrot.slane %v1056, 5
        %v1317 = vrot.slane %v1316, 4
        %v1318 = vrot.slane %v1057, 5
        %v1319 = vsel %vm1301, %v1317, %v1318
        %v1320 = vrot.slane %v1318, 4
        %v1321 = vrot.slane %v1058, 5
        %v1322 = vsel %vm1301, %v1320, %v1321
        %v1323 = vrot.slane %v1059, 5
        %v1324 = vrot.slane %v1323, 4
        %v1325 = vrot.slane %v1060, 5
        %v1326 = vsel %vm1301, %v1324, %v1325
        %v1327 = vrot.slane %v1325, 4
        %v1328 = vrot.slane %v1061, 5
        %v1329 = vsel %vm1301, %v1327, %v1328
        %v1330 = vrot.slane %v1062, 5
        %v1331 = vrot.slane %v1330, 4
        %v1332 = vrot.slane %v1063, 5
        %v1333 = vsel %vm1301, %v1331, %v1332
        %v1334 = vrot.slane %v1332, 4
        %v1335 = vrot.slane %v1064, 5
        %v1336 = vsel %vm1301, %v1334, %v1335
        %v1337 = vrot.slane %v1065, 5
        %v1338 = vrot.slane %v1337, 4
        %v1339 = vrot.slane %v1066, 5
        %v1340 = vsel %vm1301, %v1338, %v1339
        %v1341 = vrot.slane %v1339, 4
        %v1342 = vrot.slane %v1067, 5
        %v1343 = vsel %vm1301, %v1341, %v1342
        %v1344 = vrot.slane %v1068, 5
        %v1345 = vrot.slane %v1344, 4
        %v1346 = vrot.slane %v1069, 5
        %v1347 = vsel %vm1301, %v1345, %v1346
        %v1348 = vrot.slane %v1346, 4
        %v1349 = vrot.slane %v1070, 5
        %v1350 = vsel %vm1301, %v1348, %v1349
        %v1351 = vrot.slane %v1071, 5
        %v1352 = vrot.slane %v1351, 4
        %v1353 = vrot.slane %v1072, 5
        %v1354 = vsel %vm1301, %v1352, %v1353
        %v1355 = vrot.slane %v1353, 4
        %v1356 = vrot.slane %v1073, 5
        %v1357 = vsel %vm1301, %v1355, %v1356
        %v1359 = vshrl.u32 %v1074, 16
        %v1361 = vrot.slane %v1359, 4
        %v1362 = vshll.u32 %v1074, 16
        %v1364 = vrot.slane %v1362, 5
        %v1365 = vor.u32 %v1361, %v1364
        %v1366 = vrot.slane %v1365, 4
        %v1368 = vshll.u32 %v1075, 16
        %v1370 = vrot.slane %v1368, 5
        %v1371 = vsel %vm1082, %v1366, %v1370
        %v1372 = vshrl.u32 %v1075, 16
        %v1374 = vrot.slane %v1372, 4
        %v1375 = vor.u32 %v1374, %v1370
        %v1376 = vrot.slane %v1375, 4
        %v1378 = vshll.u32 %v1076, 16
        %v1380 = vrot.slane %v1378, 5
        %v1381 = vsel %vm1082, %v1376, %v1380
        %v1385 = vrot.slane %v1074, 5
        %v1386 = vrot.slane %v1385, 4
        %v1387 = vrot.slane %v1075, 5
        %v1388 = vsel %vm1301, %v1386, %v1387
        %v1389 = vrot.slane %v1387, 4
        %v1390 = vrot.slane %v1076, 5
        %v1391 = vsel %vm1301, %v1389, %v1390
        %v1393 = vshrl.u32 %v1077, 16
        %v1395 = vrot.slane %v1393, 4
        %v1396 = vshll.u32 %v1077, 16
        %v1398 = vrot.slane %v1396, 5
        %v1399 = vor.u32 %v1395, %v1398
        %v1400 = vrot.slane %v1399, 4
        %v1402 = vshll.u32 %v1078, 16
        %v1404 = vrot.slane %v1402, 5
        %v1405 = vsel %vm1082, %v1400, %v1404
        %v1406 = vshrl.u32 %v1078, 16
        %v1408 = vrot.slane %v1406, 4
        %v1409 = vor.u32 %v1408, %v1404
        %v1410 = vrot.slane %v1409, 4
        %v1412 = vshll.u32 %v1079, 16
        %v1414 = vrot.slane %v1412, 5
        %v1415 = vsel %vm1082, %v1410, %v1414
        %v1419 = vrot.slane %v1077, 5
        %v1420 = vrot.slane %v1419, 4
        %v1421 = vrot.slane %v1078, 5
        %v1422 = vsel %vm1301, %v1420, %v1421
        %v1423 = vrot.slane %v1421, 4
        %v1424 = vrot.slane %v1079, 5
        %v1425 = vsel %vm1301, %v1423, %v1424
        %v1426 = vunpack.c.l.b16 %v1050
        %v1427 = vunpack.c.l.b16 %v1051
        %v1428 = vunpack.c.l.b16 %v1053
        %v1429 = vunpack.c.l.b16 %v1054
        %v1430 = vunpack.c.l.b16 %v1056
        %v1431 = vunpack.c.l.b16 %v1057
        %v1432 = vunpack.c.l.b16 %v1059
        %v1433 = vunpack.c.l.b16 %v1060
        %v1434 = vunpack.c.l.b16 %v1062
        %v1435 = vunpack.c.l.b16 %v1063
        %v1436 = vunpack.c.l.b16 %v1065
        %v1437 = vunpack.c.l.b16 %v1066
        %v1438 = vunpack.c.l.b16 %v1068
        %v1439 = vunpack.c.l.b16 %v1069
        %v1440 = vunpack.c.l.b16 %v1071
        %v1441 = vunpack.c.l.b16 %v1072
        %v1442 = vpack.c.b16 %v1427, %v1426
        %v1443 = vpack.c.b16 %v1429, %v1428
        %v1444 = vpack.c.b16 %v1431, %v1430
        %v1445 = vpack.c.b16 %v1433, %v1432
        %v1446 = vpack.c.b16 %v1435, %v1434
        %v1447 = vpack.c.b16 %v1437, %v1436
        %v1448 = vpack.c.b16 %v1439, %v1438
        %v1449 = vpack.c.b16 %v1441, %v1440
        %v1450 = vunpack.c.l.b16 %v1096
        %v1451 = vunpack.c.l.b16 %v1106
        %v1452 = vunpack.c.l.b16 %v1120
        %v1453 = vunpack.c.l.b16 %v1130
        %v1454 = vunpack.c.l.b16 %v1144
        %v1455 = vunpack.c.l.b16 %v1154
        %v1456 = vunpack.c.l.b16 %v1168
        %v1457 = vunpack.c.l.b16 %v1178
        %v1458 = vunpack.c.l.b16 %v1192
        %v1459 = vunpack.c.l.b16 %v1202
        %v1460 = vunpack.c.l.b16 %v1216
        %v1461 = vunpack.c.l.b16 %v1226
        %v1462 = vunpack.c.l.b16 %v1240
        %v1463 = vunpack.c.l.b16 %v1250
        %v1464 = vunpack.c.l.b16 %v1264
        %v1465 = vunpack.c.l.b16 %v1274
        %v1466 = vpack.c.b16 %v1451, %v1450
        %v1467 = vpack.c.b16 %v1453, %v1452
        %v1468 = vpack.c.b16 %v1455, %v1454
        %v1469 = vpack.c.b16 %v1457, %v1456
        %v1470 = vpack.c.b16 %v1459, %v1458
        %v1471 = vpack.c.b16 %v1461, %v1460
        %v1472 = vpack.c.b16 %v1463, %v1462
        %v1473 = vpack.c.b16 %v1465, %v1464
        %1474 = vrot.lane.b32.xlu0 %v1466, 4
        %v1475 = vpop.permute.xlu0 %1474
        %1476 = vrot.lane.b32.xlu0 %v1467, 4
        %v1477 = vpop.permute.xlu0 %1476
        %1478 = vrot.lane.b32.xlu0 %v1468, 4
        %v1479 = vpop.permute.xlu0 %1478
        %1480 = vrot.lane.b32.xlu0 %v1469, 4
        %v1481 = vpop.permute.xlu0 %1480
        %1482 = vrot.lane.b32.xlu0 %v1470, 4
        %v1483 = vpop.permute.xlu0 %1482
        %1484 = vrot.lane.b32.xlu0 %v1471, 4
        %v1485 = vpop.permute.xlu0 %1484
        %1486 = vrot.lane.b32.xlu0 %v1472, 4
        %v1487 = vpop.permute.xlu0 %1486
        %1488 = vrot.lane.b32.xlu0 %v1473, 4
        %v1489 = vpop.permute.xlu0 %1488
        %v1490 = vunpack.c.l.b16 %v1305
        %v1491 = vunpack.c.l.b16 %v1308
        %v1492 = vunpack.c.l.b16 %v1312
        %v1493 = vunpack.c.l.b16 %v1315
        %v1494 = vunpack.c.l.b16 %v1319
        %v1495 = vunpack.c.l.b16 %v1322
        %v1496 = vunpack.c.l.b16 %v1326
        %v1497 = vunpack.c.l.b16 %v1329
        %v1498 = vunpack.c.l.b16 %v1333
        %v1499 = vunpack.c.l.b16 %v1336
        %v1500 = vunpack.c.l.b16 %v1340
        %v1501 = vunpack.c.l.b16 %v1343
        %v1502 = vunpack.c.l.b16 %v1347
        %v1503 = vunpack.c.l.b16 %v1350
        %v1504 = vunpack.c.l.b16 %v1354
        %v1505 = vunpack.c.l.b16 %v1357
        %v1506 = vpack.c.b16 %v1491, %v1490
        %v1507 = vpack.c.b16 %v1493, %v1492
        %v1508 = vpack.c.b16 %v1495, %v1494
        %v1509 = vpack.c.b16 %v1497, %v1496
        %v1510 = vpack.c.b16 %v1499, %v1498
        %v1511 = vpack.c.b16 %v1501, %v1500
        %v1512 = vpack.c.b16 %v1503, %v1502
        %v1513 = vpack.c.b16 %v1505, %v1504
        %1514 = vrot.lane.b32.xlu0 %v1506, 8
        %v1515 = vpop.permute.xlu0 %1514
        %1516 = vrot.lane.b32.xlu0 %v1507, 8
        %v1517 = vpop.permute.xlu0 %1516
        %1518 = vrot.lane.b32.xlu0 %v1508, 8
        %v1519 = vpop.permute.xlu0 %1518
        %1520 = vrot.lane.b32.xlu0 %v1509, 8
        %v1521 = vpop.permute.xlu0 %1520
        %1522 = vrot.lane.b32.xlu0 %v1510, 8
        %v1523 = vpop.permute.xlu0 %1522
        %1524 = vrot.lane.b32.xlu0 %v1511, 8
        %v1525 = vpop.permute.xlu0 %1524
        %1526 = vrot.lane.b32.xlu0 %v1512, 8
        %v1527 = vpop.permute.xlu0 %1526
        %1528 = vrot.lane.b32.xlu0 %v1513, 8
        %v1529 = vpop.permute.xlu0 %1528
        %v1530 = vunpack.c.l.b16 %v1074
        %v1531 = vunpack.c.l.b16 %v1075
        %v1532 = vpack.c.b16 %v1531, %v1530
        %1533 = vrot.lane.b32.xlu0 %v1443, 12
        %v1534 = vpop.permute.xlu0 %1533
        %1535 = vrot.lane.b32.xlu0 %v1444, 12
        %v1536 = vpop.permute.xlu0 %1535
        %1537 = vrot.lane.b32.xlu0 %v1445, 12
        %v1538 = vpop.permute.xlu0 %1537
        %1539 = vrot.lane.b32.xlu0 %v1446, 12
        %v1540 = vpop.permute.xlu0 %1539
        %1541 = vrot.lane.b32.xlu0 %v1447, 12
        %v1542 = vpop.permute.xlu0 %1541
        %1543 = vrot.lane.b32.xlu0 %v1448, 12
        %v1544 = vpop.permute.xlu0 %1543
        %1545 = vrot.lane.b32.xlu0 %v1449, 12
        %v1546 = vpop.permute.xlu0 %1545
        %1547 = vrot.lane.b32.xlu0 %v1532, 12
        %v1548 = vpop.permute.xlu0 %1547
        %v1549 = vunpack.c.l.b16 %v1371
        %v1550 = vunpack.c.l.b16 %v1381
        %v1551 = vpack.c.b16 %v1550, %v1549
        %1552 = vrot.lane.b32.xlu0 %v1467, 16
        %v1553 = vpop.permute.xlu0 %1552
        %1554 = vrot.lane.b32.xlu0 %v1468, 16
        %v1555 = vpop.permute.xlu0 %1554
        %1556 = vrot.lane.b32.xlu0 %v1469, 16
        %v1557 = vpop.permute.xlu0 %1556
        %1558 = vrot.lane.b32.xlu0 %v1470, 16
        %v1559 = vpop.permute.xlu0 %1558
        %1560 = vrot.lane.b32.xlu0 %v1471, 16
        %v1561 = vpop.permute.xlu0 %1560
        %1562 = vrot.lane.b32.xlu0 %v1472, 16
        %v1563 = vpop.permute.xlu0 %1562
        %1564 = vrot.lane.b32.xlu0 %v1473, 16
        %v1565 = vpop.permute.xlu0 %1564
        %1566 = vrot.lane.b32.xlu0 %v1551, 16
        %v1567 = vpop.permute.xlu0 %1566
        %v1568 = vunpack.c.l.b16 %v1388
        %v1569 = vunpack.c.l.b16 %v1391
        %v1570 = vpack.c.b16 %v1569, %v1568
        %1571 = vrot.lane.b32.xlu0 %v1507, 20
        %v1572 = vpop.permute.xlu0 %1571
        %1573 = vrot.lane.b32.xlu0 %v1508, 20
        %v1574 = vpop.permute.xlu0 %1573
        %1575 = vrot.lane.b32.xlu0 %v1509, 20
        %v1576 = vpop.permute.xlu0 %1575
        %1577 = vrot.lane.b32.xlu0 %v1510, 20
        %v1578 = vpop.permute.xlu0 %1577
        %1579 = vrot.lane.b32.xlu0 %v1511, 20
        %v1580 = vpop.permute.xlu0 %1579
        %1581 = vrot.lane.b32.xlu0 %v1512, 20
        %v1582 = vpop.permute.xlu0 %1581
        %1583 = vrot.lane.b32.xlu0 %v1513, 20
        %v1584 = vpop.permute.xlu0 %1583
        %1585 = vrot.lane.b32.xlu0 %v1570, 20
        %v1586 = vpop.permute.xlu0 %1585
        %v1587 = vunpack.c.l.b16 %v1077
        %v1588 = vunpack.c.l.b16 %v1078
        %v1589 = vpack.c.b16 %v1588, %v1587
        %1590 = vrot.lane.b32.xlu0 %v1444, 24
        %v1591 = vpop.permute.xlu0 %1590
        %1592 = vrot.lane.b32.xlu0 %v1445, 24
        %v1593 = vpop.permute.xlu0 %1592
        %1594 = vrot.lane.b32.xlu0 %v1446, 24
        %v1595 = vpop.permute.xlu0 %1594
        %1596 = vrot.lane.b32.xlu0 %v1447, 24
        %v1597 = vpop.permute.xlu0 %1596
        %1598 = vrot.lane.b32.xlu0 %v1448, 24
        %v1599 = vpop.permute.xlu0 %1598
        %1600 = vrot.lane.b32.xlu0 %v1449, 24
        %v1601 = vpop.permute.xlu0 %1600
        %1602 = vrot.lane.b32.xlu0 %v1532, 24
        %v1603 = vpop.permute.xlu0 %1602
        %1604 = vrot.lane.b32.xlu0 %v1589, 24
        %v1605 = vpop.permute.xlu0 %1604
        %v1606 = vunpack.c.l.b16 %v1405
        %v1607 = vunpack.c.l.b16 %v1415
        %v1608 = vpack.c.b16 %v1607, %v1606
        %1609 = vrot.lane.b32.xlu0 %v1468, 28
        %v1610 = vpop.permute.xlu0 %1609
        %1611 = vrot.lane.b32.xlu0 %v1469, 28
        %v1612 = vpop.permute.xlu0 %1611
        %1613 = vrot.lane.b32.xlu0 %v1470, 28
        %v1614 = vpop.permute.xlu0 %1613
        %1615 = vrot.lane.b32.xlu0 %v1471, 28
        %v1616 = vpop.permute.xlu0 %1615
        %1617 = vrot.lane.b32.xlu0 %v1472, 28
        %v1618 = vpop.permute.xlu0 %1617
        %1619 = vrot.lane.b32.xlu0 %v1473, 28
        %v1620 = vpop.permute.xlu0 %1619
        %1621 = vrot.lane.b32.xlu0 %v1551, 28
        %v1622 = vpop.permute.xlu0 %1621
        %1623 = vrot.lane.b32.xlu0 %v1608, 28
        %v1624 = vpop.permute.xlu0 %1623
        %v1625 = vunpack.c.l.b16 %v1422
        %v1626 = vunpack.c.l.b16 %v1425
        %v1627 = vpack.c.b16 %v1626, %v1625
        %1628 = vrot.lane.b32.xlu0 %v1508, 32
        %v1629 = vpop.permute.xlu0 %1628
        %1630 = vrot.lane.b32.xlu0 %v1509, 32
        %v1631 = vpop.permute.xlu0 %1630
        %1632 = vrot.lane.b32.xlu0 %v1510, 32
        %v1633 = vpop.permute.xlu0 %1632
        %1634 = vrot.lane.b32.xlu0 %v1511, 32
        %v1635 = vpop.permute.xlu0 %1634
        %1636 = vrot.lane.b32.xlu0 %v1512, 32
        %v1637 = vpop.permute.xlu0 %1636
        %1638 = vrot.lane.b32.xlu0 %v1513, 32
        %v1639 = vpop.permute.xlu0 %1638
        %1640 = vrot.lane.b32.xlu0 %v1570, 32
        %v1641 = vpop.permute.xlu0 %1640
        %1642 = vrot.lane.b32.xlu0 %v1627, 32
        %v1643 = vpop.permute.xlu0 %1642
        %vm1644 = vcmask 31744
        %v1647 = vsel %vm1644, %v1442, %v1475
        %v1650 = vsel %vm1644, %v1443, %v1477
        %v1653 = vsel %vm1644, %v1444, %v1479
        %v1656 = vsel %vm1644, %v1445, %v1481
        %v1659 = vsel %vm1644, %v1446, %v1483
        %v1662 = vsel %vm1644, %v1447, %v1485
        %v1665 = vsel %vm1644, %v1448, %v1487
        %v1668 = vsel %vm1644, %v1449, %v1489
        %vm1669 = vcmask 64512
        %v1671 = vsel %vm1669, %v1647, %v1515
        %v1673 = vsel %vm1669, %v1650, %v1517
        %v1675 = vsel %vm1669, %v1653, %v1519
        %v1677 = vsel %vm1669, %v1656, %v1521
        %v1679 = vsel %vm1669, %v1659, %v1523
        %v1681 = vsel %vm1669, %v1662, %v1525
        %v1683 = vsel %vm1669, %v1665, %v1527
        %v1685 = vsel %vm1669, %v1668, %v1529
        %vm1686 = vcmask 97280
        %v1688 = vsel %vm1686, %v1671, %v1534
        %v1690 = vsel %vm1686, %v1673, %v1536
        %v1692 = vsel %vm1686, %v1675, %v1538
        %v1694 = vsel %vm1686, %v1677, %v1540
        %v1696 = vsel %vm1686, %v1679, %v1542
        %v1698 = vsel %vm1686, %v1681, %v1544
        %v1700 = vsel %vm1686, %v1683, %v1546
        %v1702 = vsel %vm1686, %v1685, %v1548
        %v1704 = vsel %vm479, %v1688, %v1553
        %v1706 = vsel %vm479, %v1690, %v1555
        %v1708 = vsel %vm479, %v1692, %v1557
        %v1710 = vsel %vm479, %v1694, %v1559
        %v1712 = vsel %vm479, %v1696, %v1561
        %v1714 = vsel %vm479, %v1698, %v1563
        %v1716 = vsel %vm479, %v1700, %v1565
        %v1718 = vsel %vm479, %v1702, %v1567
        %vm1719 = vcmask 162816
        %v1721 = vsel %vm1719, %v1704, %v1572
        %v1723 = vsel %vm1719, %v1706, %v1574
        %v1725 = vsel %vm1719, %v1708, %v1576
        %v1727 = vsel %vm1719, %v1710, %v1578
        %v1729 = vsel %vm1719, %v1712, %v1580
        %v1731 = vsel %vm1719, %v1714, %v1582
        %v1733 = vsel %vm1719, %v1716, %v1584
        %v1735 = vsel %vm1719, %v1718, %v1586
        %vm1736 = vcmask 195584
        %v1738 = vsel %vm1736, %v1721, %v1591
        %v1740 = vsel %vm1736, %v1723, %v1593
        %v1742 = vsel %vm1736, %v1725, %v1595
        %v1744 = vsel %vm1736, %v1727, %v1597
        %v1746 = vsel %vm1736, %v1729, %v1599
        %v1748 = vsel %vm1736, %v1731, %v1601
        %v1750 = vsel %vm1736, %v1733, %v1603
        %v1752 = vsel %vm1736, %v1735, %v1605
        %vm1753 = vcmask 228352
        %v1755 = vsel %vm1753, %v1738, %v1610
        %v1757 = vsel %vm1753, %v1740, %v1612
        %v1759 = vsel %vm1753, %v1742, %v1614
        %v1761 = vsel %vm1753, %v1744, %v1616
        %v1763 = vsel %vm1753, %v1746, %v1618
        %v1765 = vsel %vm1753, %v1748, %v1620
        %v1767 = vsel %vm1753, %v1750, %v1622
        %v1769 = vsel %vm1753, %v1752, %v1624
        %vm1770 = vcmask 261120
        %v1772 = vsel %vm1770, %v1755, %v1629
        %v1774 = vsel %vm1770, %v1757, %v1631
        %v1776 = vsel %vm1770, %v1759, %v1633
        %v1778 = vsel %vm1770, %v1761, %v1635
        %v1780 = vsel %vm1770, %v1763, %v1637
        %v1782 = vsel %vm1770, %v1765, %v1639
        %v1784 = vsel %vm1770, %v1767, %v1641
        %v1786 = vsel %vm1770, %v1769, %v1643
        %v1787 = vld [vmem:[%s2] sm:$0xf]
        %v1788 = vld [vmem:[%s2 + $0x4] sm:$0xf]
        %v1789 = vld [vmem:[%s2 + $0x8] sm:$0xf]
        %v1790 = vld [vmem:[%s2 + $0xc] sm:$0xf]
        %v1791 = vld [vmem:[%s2 + $0x10] sm:$0x3]
        %v1797 = vunpack.c.l.b16 %v1787
        %v1798 = vunpack.c.l.b16 %v1788
        %v1799 = vunpack.c.l.b16 %v1789
        %v1800 = vunpack.c.l.b16 %v1790
        %v1801 = vunpack.c.l.b16 %v1791
        %v1802 = vpack.c.b16 %v1798, %v1797
        %v1803 = vpack.c.b16 %v1800, %v1799
        %v1804 = vpack.c.b16 %v1801, %v1801
        %vm1807 = vcmask 293888
        %v1808 = vsel %vm1807, %v1772, 0
        %v1810 = vsel %vm1807, %v1774, 0
        %v1812 = vsel %vm1807, %v1776, 0
        %v1814 = vsel %vm1807, %v1778, 0
        %v1816 = vsel %vm1807, %v1780, 0
        %v1818 = vsel %vm1807, %v1782, 0
        %v1820 = vsel %vm1807, %v1784, 0
        %v1822 = vsel %vm1807, %v1786, 0
        %vm1824 = vcmask 1041408
        %v1826 = vsel %vm1824, %v1804, 0
        %1828 = vmatprep.subr.bf16.mxu0 0
        %1829 = vmatpush1.bf16.msra.mxu0 %v1802
        %1830 = vmatprep.subr.bf16.mxu0 0
        %1831 = vmatpush1.bf16.msra.mxu0 %v1803
        %1832 = vmatprep.subr.bf16.mxu0 0
        %1833 = vmatpush1.bf16.msra.mxu0 %v1826
        %1834 = vmatprep.subr.bf16.mxu0 0
        %1835 = vmatpush1.bf16.msra.mxu0 0
        %1836 = vmatprep.subr.bf16.mxu0 0
        %1837 = vmatpush1.bf16.msra.mxu0 0
        %1838 = vmatprep.subr.bf16.mxu0 0
        %1839 = vmatpush1.bf16.msra.mxu0 0
        %1840 = vmatprep.subr.bf16.mxu0 0
        %1841 = vmatpush1.bf16.msra.mxu0 0
        %1842 = vmatprep.subr.bf16.mxu0 0
        %1843 = vmatpush1.bf16.msra.mxu0 0
        %1844 = vmatprep.subr.bf16.mxu0 0
        %1845 = vmatpush1.bf16.msra.mxu0 0
        %1846 = vmatprep.subr.bf16.mxu0 0
        %1847 = vmatpush1.bf16.msra.mxu0 0
        %1848 = vmatprep.subr.bf16.mxu0 0
        %1849 = vmatpush1.bf16.msra.mxu0 0
        %1850 = vmatprep.subr.bf16.mxu0 0
        %1851 = vmatpush1.bf16.msra.mxu0 0
        %1852 = vmatprep.subr.bf16.mxu0 0
        %1853 = vmatpush1.bf16.msra.mxu0 0
        %1854 = vmatprep.subr.bf16.mxu0 0
        %1855 = vmatpush1.bf16.msra.mxu0 0
        %1856 = vmatprep.subr.bf16.mxu0 0
        %1857 = vmatpush1.bf16.msra.mxu0 0
        %1858 = vmatprep.subr.bf16.mxu0 0
        %1859 = vmatpush1.bf16.msra.mxu0 0
        %1860 = vmatprep.mubr.bf16.mxu0 0
        %1861 = vmatmul.mubr.bf16.gmra.mrb[0].mxu0 %v1808
        %v1862 = vpop.f32.mrb[0].mxu0
        %v1863 = vadd.f32 0.0, %v1862
        %v1864 = vpop.f32.mrb[0].mxu0
        %v1865 = vpop.f32.mrb[0].mxu0
        %v1866 = vadd.f32 0.0, %v1865
        %v1867 = vpop.f32.mrb[0].mxu0
        %1868 = vmatprep.mubr.bf16.mxu0 0
        %1869 = vmatmul.mubr.bf16.gmra.mrb[0].mxu0 %v1810
        %v1870 = vpop.f32.mrb[0].mxu0
        %v1871 = vadd.f32 0.0, %v1870
        %v1872 = vpop.f32.mrb[0].mxu0
        %v1873 = vpop.f32.mrb[0].mxu0
        %v1874 = vadd.f32 0.0, %v1873
        %v1875 = vpop.f32.mrb[0].mxu0
        %1876 = vmatprep.mubr.bf16.mxu0 0
        %1877 = vmatmul.mubr.bf16.gmra.mrb[0].mxu0 %v1812
        %v1878 = vpop.f32.mrb[0].mxu0
        %v1879 = vadd.f32 0.0, %v1878
        %v1880 = vpop.f32.mrb[0].mxu0
        %v1881 = vpop.f32.mrb[0].mxu0
        %v1882 = vadd.f32 0.0, %v1881
        %v1883 = vpop.f32.mrb[0].mxu0
        %1884 = vmatprep.mubr.bf16.mxu0 0
        %1885 = vmatmul.mubr.bf16.gmra.mrb[0].mxu0 %v1814
        %v1886 = vpop.f32.mrb[0].mxu0
        %v1887 = vadd.f32 0.0, %v1886
        %v1888 = vpop.f32.mrb[0].mxu0
        %v1889 = vpop.f32.mrb[0].mxu0
        %v1890 = vadd.f32 0.0, %v1889
        %v1891 = vpop.f32.mrb[0].mxu0
        %1892 = vmatprep.mubr.bf16.mxu0 0
        %1893 = vmatmul.mubr.bf16.gmra.mrb[0].mxu0 %v1816
        %v1894 = vpop.f32.mrb[0].mxu0
        %v1895 = vadd.f32 0.0, %v1894
        %v1896 = vpop.f32.mrb[0].mxu0
        %v1897 = vpop.f32.mrb[0].mxu0
        %v1898 = vadd.f32 0.0, %v1897
        %v1899 = vpop.f32.mrb[0].mxu0
        %1900 = vmatprep.mubr.bf16.mxu0 0
        %1901 = vmatmul.mubr.bf16.gmra.mrb[0].mxu0 %v1818
        %v1902 = vpop.f32.mrb[0].mxu0
        %v1903 = vadd.f32 0.0, %v1902
        %v1904 = vpop.f32.mrb[0].mxu0
        %v1905 = vpop.f32.mrb[0].mxu0
        %v1906 = vadd.f32 0.0, %v1905
        %v1907 = vpop.f32.mrb[0].mxu0
        %1908 = vmatprep.mubr.bf16.mxu0 0
        %1909 = vmatmul.mubr.bf16.gmra.mrb[0].mxu0 %v1820
        %v1910 = vpop.f32.mrb[0].mxu0
        %v1911 = vadd.f32 0.0, %v1910
        %v1912 = vpop.f32.mrb[0].mxu0
        %v1913 = vpop.f32.mrb[0].mxu0
        %v1914 = vadd.f32 0.0, %v1913
        %v1915 = vpop.f32.mrb[0].mxu0
        %1916 = vmatprep.mubr.bf16.mxu0 0
        %1917 = vmatmul.mubr.bf16.gmra.mrb[0].mxu0 %v1822
        %v1918 = vpop.f32.mrb[0].mxu0
        %v1919 = vadd.f32 0.0, %v1918
        %v1920 = vpop.f32.mrb[0].mxu0
        %v1921 = vpop.f32.mrb[0].mxu0
        %v1922 = vadd.f32 0.0, %v1921
        %v1923 = vpop.f32.mrb[0].mxu0
        %1924 = vdwg.mxu0
        %v1925 = vld [vmem:[%s6] sm:$0x1]
        %v1927 = vlaneseq
        %v1928 = vshrl.u32 %v1927, 7
        %v1929 = vsub.s32 0, %v1928
        %v1930 = vrot.slane %v1925, %v1929
        %v1932 = vmul.f32 %v1863, %v1930
        %v1933 = vmul.f32 %v1866, %v1930
        %v1934 = vmul.f32 %v1871, %v1930
        %v1935 = vmul.f32 %v1874, %v1930
        %v1936 = vmul.f32 %v1879, %v1930
        %v1937 = vmul.f32 %v1882, %v1930
        %v1938 = vmul.f32 %v1887, %v1930
        %v1939 = vmul.f32 %v1890, %v1930
        %v1940 = vmul.f32 %v1895, %v1930
        %v1941 = vmul.f32 %v1898, %v1930
        %v1942 = vmul.f32 %v1903, %v1930
        %v1943 = vmul.f32 %v1906, %v1930
        %v1944 = vmul.f32 %v1911, %v1930
        %v1945 = vmul.f32 %v1914, %v1930
        %v1946 = vmul.f32 %v1919, %v1930
        %v1947 = vmul.f32 %v1922, %v1930
        %v1948 = vld [vmem:[%s7] sm:$0x1]
        %v1950 = vlaneseq
        %v1951 = vshrl.u32 %v1950, 7
        %v1952 = vsub.s32 0, %v1951
        %v1953 = vrot.slane %v1948, %v1952
        %v1955 = vadd.f32 %v1932, %v1953
        %v1956 = vadd.f32 %v1933, %v1953
        %v1957 = vadd.f32 %v1934, %v1953
        %v1958 = vadd.f32 %v1935, %v1953
        %v1959 = vadd.f32 %v1936, %v1953
        %v1960 = vadd.f32 %v1937, %v1953
        %v1961 = vadd.f32 %v1938, %v1953
        %v1962 = vadd.f32 %v1939, %v1953
        %v1963 = vadd.f32 %v1940, %v1953
        %v1964 = vadd.f32 %v1941, %v1953
        %v1965 = vadd.f32 %v1942, %v1953
        %v1966 = vadd.f32 %v1943, %v1953
        %v1967 = vadd.f32 %v1944, %v1953
        %v1968 = vadd.f32 %v1945, %v1953
        %v1969 = vadd.f32 %v1946, %v1953
        %v1970 = vadd.f32 %v1947, %v1953
        %v1971 = vmax.f32 %v1955, 0.0
        %v1972 = vmax.f32 %v1956, 0.0
        %v1973 = vmax.f32 %v1957, 0.0
        %v1974 = vmax.f32 %v1958, 0.0
        %v1975 = vmax.f32 %v1959, 0.0
        %v1976 = vmax.f32 %v1960, 0.0
        %v1977 = vmax.f32 %v1961, 0.0
        %v1978 = vmax.f32 %v1962, 0.0
        %v1979 = vmax.f32 %v1963, 0.0
        %v1980 = vmax.f32 %v1964, 0.0
        %v1981 = vmax.f32 %v1965, 0.0
        %v1982 = vmax.f32 %v1966, 0.0
        %v1983 = vmax.f32 %v1967, 0.0
        %v1984 = vmax.f32 %v1968, 0.0
        %v1985 = vmax.f32 %v1969, 0.0
        %v1986 = vmax.f32 %v1970, 0.0
        %v1987 = vpack.c.bf16 %v1972, %v1971
        %v1988 = vpack.c.bf16 %v1974, %v1973
        %v1989 = vpack.c.bf16 %v1976, %v1975
        %v1990 = vpack.c.bf16 %v1978, %v1977
        %v1991 = vpack.c.bf16 %v1980, %v1979
        %v1992 = vpack.c.bf16 %v1982, %v1981
        %v1993 = vpack.c.bf16 %v1984, %v1983
        %v1994 = vpack.c.bf16 %v1986, %v1985
        %v1995 = vld [vmem:[%s3] sm:$0x3]
        %v1997 = vsel %vm1644, %v1987, 0
        %v2000 = vsel %vm1644, %v1988, 0
        %v2003 = vsel %vm1644, %v1989, 0
        %v2006 = vsel %vm1644, %v1990, 0
        %v2009 = vsel %vm1644, %v1991, 0
        %v2012 = vsel %vm1644, %v1992, 0
        %v2015 = vsel %vm1644, %v1993, 0
        %v2018 = vsel %vm1644, %v1994, 0
        %v2021 = vsel %vm1824, %v1995, 0
        %2023 = vmatprep.subr.bf16.mxu0 0
        %2024 = vmatpush1.bf16.msra.mxu0 %v2021
        %2025 = vmatprep.subr.bf16.mxu0 0
        %2026 = vmatpush1.bf16.msra.mxu0 0
        %2027 = vmatprep.subr.bf16.mxu0 0
        %2028 = vmatpush1.bf16.msra.mxu0 0
        %2029 = vmatprep.subr.bf16.mxu0 0
        %2030 = vmatpush1.bf16.msra.mxu0 0
        %2031 = vmatprep.subr.bf16.mxu0 0
        %2032 = vmatpush1.bf16.msra.mxu0 0
        %2033 = vmatprep.subr.bf16.mxu0 0
        %2034 = vmatpush1.bf16.msra.mxu0 0
        %2035 = vmatprep.subr.bf16.mxu0 0
        %2036 = vmatpush1.bf16.msra.mxu0 0
        %2037 = vmatprep.subr.bf16.mxu0 0
        %2038 = vmatpush1.bf16.msra.mxu0 0
        %2039 = vmatprep.subr.bf16.mxu0 0
        %2040 = vmatpush1.bf16.msra.mxu0 0
        %2041 = vmatprep.subr.bf16.mxu0 0
        %2042 = vmatpush1.bf16.msra.mxu0 0
        %2043 = vmatprep.subr.bf16.mxu0 0
        %2044 = vmatpush1.bf16.msra.mxu0 0
        %2045 = vmatprep.subr.bf16.mxu0 0
        %2046 = vmatpush1.bf16.msra.mxu0 0
        %2047 = vmatprep.subr.bf16.mxu0 0
        %2048 = vmatpush1.bf16.msra.mxu0 0
        %2049 = vmatprep.subr.bf16.mxu0 0
        %2050 = vmatpush1.bf16.msra.mxu0 0
        %2051 = vmatprep.subr.bf16.mxu0 0
        %2052 = vmatpush1.bf16.msra.mxu0 0
        %2053 = vmatprep.subr.bf16.mxu0 0
        %2054 = vmatpush1.bf16.msra.mxu0 0
        %2055 = vmatprep.mubr.bf16.mxu0 0
        %2056 = vmatmul.mubr.bf16.gmra.mrb[0].mxu0 %v1997
        %v2057 = vpop.f32.mrb[0].mxu0
        %v2058 = vadd.f32 0.0, %v2057
        %v2059 = vpop.f32.mrb[0].mxu0
        %v2060 = vpop.f32.mrb[0].mxu0
        %v2061 = vadd.f32 0.0, %v2060
        %v2062 = vpop.f32.mrb[0].mxu0
        %2063 = vmatprep.mubr.bf16.mxu0 0
        %2064 = vmatmul.mubr.bf16.gmra.mrb[0].mxu0 %v2000
        %v2065 = vpop.f32.mrb[0].mxu0
        %v2066 = vadd.f32 0.0, %v2065
        %v2067 = vpop.f32.mrb[0].mxu0
        %v2068 = vpop.f32.mrb[0].mxu0
        %v2069 = vadd.f32 0.0, %v2068
        %v2070 = vpop.f32.mrb[0].mxu0
        %2071 = vmatprep.mubr.bf16.mxu0 0
        %2072 = vmatmul.mubr.bf16.gmra.mrb[0].mxu0 %v2003
        %v2073 = vpop.f32.mrb[0].mxu0
        %v2074 = vadd.f32 0.0, %v2073
        %v2075 = vpop.f32.mrb[0].mxu0
        %v2076 = vpop.f32.mrb[0].mxu0
        %v2077 = vadd.f32 0.0, %v2076
        %v2078 = vpop.f32.mrb[0].mxu0
        %2079 = vmatprep.mubr.bf16.mxu0 0
        %2080 = vmatmul.mubr.bf16.gmra.mrb[0].mxu0 %v2006
        %v2081 = vpop.f32.mrb[0].mxu0
        %v2082 = vadd.f32 0.0, %v2081
        %v2083 = vpop.f32.mrb[0].mxu0
        %v2084 = vpop.f32.mrb[0].mxu0
        %v2085 = vadd.f32 0.0, %v2084
        %v2086 = vpop.f32.mrb[0].mxu0
        %2087 = vmatprep.mubr.bf16.mxu0 0
        %2088 = vmatmul.mubr.bf16.gmra.mrb[0].mxu0 %v2009
        %v2089 = vpop.f32.mrb[0].mxu0
        %v2090 = vadd.f32 0.0, %v2089
        %v2091 = vpop.f32.mrb[0].mxu0
        %v2092 = vpop.f32.mrb[0].mxu0
        %v2093 = vadd.f32 0.0, %v2092
        %v2094 = vpop.f32.mrb[0].mxu0
        %2095 = vmatprep.mubr.bf16.mxu0 0
        %2096 = vmatmul.mubr.bf16.gmra.mrb[0].mxu0 %v2012
        %v2097 = vpop.f32.mrb[0].mxu0
        %v2098 = vadd.f32 0.0, %v2097
        %v2099 = vpop.f32.mrb[0].mxu0
        %v2100 = vpop.f32.mrb[0].mxu0
        %v2101 = vadd.f32 0.0, %v2100
        %v2102 = vpop.f32.mrb[0].mxu0
        %2103 = vmatprep.mubr.bf16.mxu0 0
        %2104 = vmatmul.mubr.bf16.gmra.mrb[0].mxu0 %v2015
        %v2105 = vpop.f32.mrb[0].mxu0
        %v2106 = vadd.f32 0.0, %v2105
        %v2107 = vpop.f32.mrb[0].mxu0
        %v2108 = vpop.f32.mrb[0].mxu0
        %v2109 = vadd.f32 0.0, %v2108
        %v2110 = vpop.f32.mrb[0].mxu0
        %2111 = vmatprep.mubr.bf16.mxu0 0
        %2112 = vmatmul.mubr.bf16.gmra.mrb[0].mxu0 %v2018
        %v2113 = vpop.f32.mrb[0].mxu0
        %v2114 = vadd.f32 0.0, %v2113
        %v2115 = vpop.f32.mrb[0].mxu0
        %v2116 = vpop.f32.mrb[0].mxu0
        %v2117 = vadd.f32 0.0, %v2116
        %v2118 = vpop.f32.mrb[0].mxu0
        %2119 = vdwg.mxu0
        %v2120 = vld [vmem:[%s8] sm:$0x1]
        %v2122 = vlaneseq
        %v2123 = vshrl.u32 %v2122, 7
        %v2124 = vsub.s32 0, %v2123
        %v2125 = vrot.slane %v2120, %v2124
        %v2127 = vmul.f32 %v2058, %v2125
        %v2128 = vmul.f32 %v2061, %v2125
        %v2129 = vmul.f32 %v2066, %v2125
        %v2130 = vmul.f32 %v2069, %v2125
        %v2131 = vmul.f32 %v2074, %v2125
        %v2132 = vmul.f32 %v2077, %v2125
        %v2133 = vmul.f32 %v2082, %v2125
        %v2134 = vmul.f32 %v2085, %v2125
        %v2135 = vmul.f32 %v2090, %v2125
        %v2136 = vmul.f32 %v2093, %v2125
        %v2137 = vmul.f32 %v2098, %v2125
        %v2138 = vmul.f32 %v2101, %v2125
        %v2139 = vmul.f32 %v2106, %v2125
        %v2140 = vmul.f32 %v2109, %v2125
        %v2141 = vmul.f32 %v2114, %v2125
        %v2142 = vmul.f32 %v2117, %v2125
        %v2143 = vld [vmem:[%s9] sm:$0x1]
        %v2145 = vlaneseq
        %v2146 = vshrl.u32 %v2145, 7
        %v2147 = vsub.s32 0, %v2146
        %v2148 = vrot.slane %v2143, %v2147
        %v2150 = vadd.f32 %v2127, %v2148
        %v2151 = vadd.f32 %v2128, %v2148
        %v2152 = vadd.f32 %v2129, %v2148
        %v2153 = vadd.f32 %v2130, %v2148
        %v2154 = vadd.f32 %v2131, %v2148
        %v2155 = vadd.f32 %v2132, %v2148
        %v2156 = vadd.f32 %v2133, %v2148
        %v2157 = vadd.f32 %v2134, %v2148
        %v2158 = vadd.f32 %v2135, %v2148
        %v2159 = vadd.f32 %v2136, %v2148
        %v2160 = vadd.f32 %v2137, %v2148
        %v2161 = vadd.f32 %v2138, %v2148
        %v2162 = vadd.f32 %v2139, %v2148
        %v2163 = vadd.f32 %v2140, %v2148
        %v2164 = vadd.f32 %v2141, %v2148
        %v2165 = vadd.f32 %v2142, %v2148
        %v2166 = vadd.f32 %v2150, %v443
        %v2167 = vadd.f32 %v2151, %v444
        %v2168 = vadd.f32 %v2152, %v445
        %v2169 = vadd.f32 %v2153, %v446
        %v2170 = vadd.f32 %v2154, %v447
        %v2171 = vadd.f32 %v2155, %v448
        %v2172 = vadd.f32 %v2156, %v449
        %v2173 = vadd.f32 %v2157, %v450
        %v2174 = vadd.f32 %v2158, %v451
        %v2175 = vadd.f32 %v2159, %v452
        %v2176 = vadd.f32 %v2160, %v453
        %v2177 = vadd.f32 %v2161, %v454
        %v2178 = vadd.f32 %v2162, %v455
        %v2179 = vadd.f32 %v2163, %v456
        %v2180 = vadd.f32 %v2164, %v457
        %v2181 = vadd.f32 %v2165, %v458
        %v2182 = vmax.f32 %v2166, 0.0
        %v2183 = vmax.f32 %v2167, 0.0
        %v2184 = vmax.f32 %v2168, 0.0
        %v2185 = vmax.f32 %v2169, 0.0
        %v2186 = vmax.f32 %v2170, 0.0
        %v2187 = vmax.f32 %v2171, 0.0
        %v2188 = vmax.f32 %v2172, 0.0
        %v2189 = vmax.f32 %v2173, 0.0
        %v2190 = vmax.f32 %v2174, 0.0
        %v2191 = vmax.f32 %v2175, 0.0
        %v2192 = vmax.f32 %v2176, 0.0
        %v2193 = vmax.f32 %v2177, 0.0
        %v2194 = vmax.f32 %v2178, 0.0
        %v2195 = vmax.f32 %v2179, 0.0
        %v2196 = vmax.f32 %v2180, 0.0
        %v2197 = vmax.f32 %v2181, 0.0
        %2198 = vst.msk [vmem:[%s325] sm:$0xff] %vm479, %v2182
        %2199 = vst.msk [vmem:[%s325 + $0x8] sm:$0xff] %vm479, %v2183
        %2200 = vst.msk [vmem:[%s325 + $0x10] sm:$0xff] %vm479, %v2184
        %2201 = vst.msk [vmem:[%s325 + $0x18] sm:$0xff] %vm479, %v2185
        %2202 = vst.msk [vmem:[%s325 + $0x20] sm:$0xff] %vm479, %v2186
        %2203 = vst.msk [vmem:[%s325 + $0x28] sm:$0xff] %vm479, %v2187
        %2204 = vst.msk [vmem:[%s325 + $0x30] sm:$0xff] %vm479, %v2188
        %2205 = vst.msk [vmem:[%s325 + $0x38] sm:$0xff] %vm479, %v2189
        %2206 = vst.msk [vmem:[%s325 + $0x40] sm:$0xff] %vm479, %v2190
        %2207 = vst.msk [vmem:[%s325 + $0x48] sm:$0xff] %vm479, %v2191
        %2208 = vst.msk [vmem:[%s325 + $0x50] sm:$0xff] %vm479, %v2192
        %2209 = vst.msk [vmem:[%s325 + $0x58] sm:$0xff] %vm479, %v2193
        %2210 = vst.msk [vmem:[%s325 + $0x60] sm:$0xff] %vm479, %v2194
        %2211 = vst.msk [vmem:[%s325 + $0x68] sm:$0xff] %vm479, %v2195
        %2212 = vst.msk [vmem:[%s325 + $0x70] sm:$0xff] %vm479, %v2196
        %2213 = vst.msk [vmem:[%s325 + $0x78] sm:$0xff] %vm479, %v2197
        %s2214 = sand.u32 %s235, 1
        %s2215 = scalar_lea.sflag [#allocation6], %s2214
        %s2216 = sand.u32 %s235, 1
        %s2217 = smul.addr %s2216, 128
        %s2218 = scalar_lea.vmem [#allocation5], %s2217
        // Predicated region
        $region93: #{tpu_custom_call.1} parent=55 // pred_check
          %p2219 = pneg %p245
        $region94: #{tpu_custom_call.1} parent=55 // pred_check_branch
          %2221 = sbr.rel (%p2219) target = $region96
        $region95: #{tpu_custom_call.1} parent=55 // pred_region
          %s2222 = smul.u32 8, %s29
          %s2224 = ssub.s32 2048, 2048
          %2225 = vsyncadd %s2215, %s2224
          %s2226 = smul.addr %s2222, 2
          %s2227 = smul.addr %s28, 32
          %s2228 = sadd.s32 %s2226, %s2227
          %s2229 = smul.addr %s2228, 128
          %s2230 = scalar_lea.hbm %s10, %s2229
          %s2231 = sshll.u32 %s2218, 4
          %s2232 = int_to_ptr.vmem [resolvable:$true] %s2231
          %2237 = dma.vmem_to_hbm [thread:$0]  %s2232, 2048, %s2230, %s2215, 128, 128, 8
        $region96: #{tpu_custom_call.1} parent=55 // pred_fallthru
          _
      $region56: #{tpu_custom_call.1} parent=5 // pred_fallthru
        _
      %p2238 = scmp.le.s32.totalorder 2, %s19
      // Predicated region
      $region97: #{tpu_custom_call.1} parent=5 // pred_check
        %p2239 = pneg %p2238
      $region98: #{tpu_custom_call.1} parent=5 // pred_check_branch
        %2241 = sbr.rel (%p2239) target = $region100
      $region99: #{tpu_custom_call.1} parent=5 // pred_region
        %s2242 = ssub.s32 %s19, 2
        // Predicated region
        $region101: #{tpu_custom_call.1} parent=99 // pred_check
          %p2243 = pneg %p251
        $region102: #{tpu_custom_call.1} parent=99 // pred_check_branch
          %2245 = sbr.rel (%p2243) target = $region104
        $region103: #{tpu_custom_call.1} parent=99 // pred_region
          %s2246 = sand.u32 %s236, 1
          %s2247 = scalar_lea.sflag [#allocation6], %s2246
          %s2248 = sand.u32 %s236, 1
          %s2249 = smul.addr %s2248, 128
          %s2250 = scalar_lea.vmem [#allocation5], %s2249
          %2251 = dma.done %s2247, 2048
        $region104: #{tpu_custom_call.1} parent=99 // pred_fallthru
          _
      $region100: #{tpu_custom_call.1} parent=5 // pred_fallthru
        _
    $region6: #{tpu_custom_call.1} parent=1 // loop_footer
      %s23 = sadd.s32 1, %s19
    $region7: #{tpu_custom_call.1} parent=1 // loop_footer_branch
      %18 = sbr.rel target = $region3
    $region8: #{tpu_custom_call.1} parent=1 // loop_exit
      _
    %2252 = vsyncpa [#allocation6], 1
    %s2253 = scalar_lea.sflag [#allocation6], 1
    %2254 = vsyncpa %s2253, 1
  %2255 = vsyncmov [#allocation4]
  %s2256 = vpop.sfrf %2255
  %p2257 = scmp.eq.s32.totalorder %s2256, 0
  %p2258 = pneg %p2257
  %2260 = shalt.err (%p2258)
  %s2261 = scalar_lea.sflag [#allocation4], 1
  %2262 = vsyncmov %s2261
  %s2263 = vpop.sfrf %2262
  %p2264 = scmp.eq.s32.totalorder %s2263, 0
  %p2265 = pneg %p2264
  %2267 = shalt.err (%p2265)
  %s2268 = scalar_lea.sflag [#allocation4], 2
  %2269 = vsyncmov %s2268
  %s2270 = vpop.sfrf %2269
  %p2271 = scmp.eq.s32.totalorder %s2270, 0
  %p2272 = pneg %p2271
  %2274 = shalt.err (%p2272)

</llo_original>
